<compile_context>
chip_gen: v7x
topology: tpu7x:2x2x1
jax: 0.10.0
libtpu: 0.0.40
codegen_flags: <defaults>
</compile_context>

<pallas_src>
import functools

import jax
import jax.numpy as jnp
from jax.experimental import pallas as pl
from jax.experimental.pallas import tpu as pltpu


def _conv_stats_kernel(x_ref, w_ref, b_ref, y_ref, stats_ref, *, k, Wp, Wo, L):
    """Fused conv(+bias) and BN partial statistics for one batch element.

    x_ref     : (C, Hp*Wp + k - 1)  zero-padded, flattened image (compute dtype)
    w_ref     : (k*k, O, C)         per-shift weight slices       (compute dtype)
    b_ref     : (O, 1)              conv bias                     (f32)
    y_ref     : (O, L)   conv output on the padded-width grid, L = Ho*Wp (f32)
    stats_ref : (O, 2)   [sum, sum-of-squares] over the valid positions (f32)
    """
    O = y_ref.shape[0]
    acc = jnp.zeros((O, L), jnp.float32)
    # k*k shifted windows of the flattened image.  All slices are static; the
    # whole (tiny) image stays resident in VMEM -- no HBM im2col round trip.
    for di in range(k):
        for dj in range(k):
            r = di * k + dj
            off = di * Wp + dj
            acc = acc + jnp.dot(w_ref[r], x_ref[:, off:off + L],
                                preferred_element_type=jnp.float32)
    y = acc + b_ref[...]                       # (O, L) += (O, 1) broadcast
    y_ref[...] = y

    # Valid lanes are t = ho*Wp + wo with wo < Wo; lanes with wo >= Wo are
    # row-boundary junk (excluded from BN stats, sliced away in the wrapper).
    col = jax.lax.broadcasted_iota(jnp.int32, (1, L), 1) % Wp
    yv = jnp.where(col < Wo, y, 0.0)
    stats_ref[:, 0:1] = jnp.sum(yv, axis=1, keepdims=True)
    stats_ref[:, 1:2] = jnp.sum(yv * yv, axis=1, keepdims=True)


def _bn_scale_kernel(y_ref, a_ref, b_ref, o_ref):
    # out = y*a + b  with  a = gamma*scale/sqrt(var+eps)
    #                      b = (beta - mean*gamma/sqrt(var+eps)) * scale
    o_ref[...] = (y_ref[...] * a_ref[...] + b_ref[...]).astype(o_ref.dtype)


def conv2d_decomp_scaled_bn(x, v, g, conv_bias, bn_gamma, bn_beta, scale, *,
                            kernel_size, stride=1, padding=0, eps=1e-5,
                            compute_dtype=jnp.bfloat16):
    """Forward pass of Conv2dDecompScaledWithBN (training-mode BatchNorm)."""
    if stride != 1:
        raise NotImplementedError("only stride=1 is implemented")  # TODO(synk)

    N, C, H, W = x.shape
    O = v.shape[0]
    k = kernel_size
    Hp, Wp = H + 2 * padding, W + 2 * padding
    Ho, Wo = Hp - k + 1, Wp - k + 1
    L = Ho * Wp                      # conv output length on padded-width grid
    Lx = Hp * Wp + (k - 1)           # flattened image + tail pad for last shift

    # ---- parameter glue (tiny): decomposed weight, per-shift layout ----
    w = (v * g[:, :, None, None]).astype(compute_dtype)          # (O, C, k, k)
    wr = jnp.transpose(w, (2, 3, 0, 1)).reshape(k * k, O, C)     # (k*k, O, C)
    bias2 = conv_bias.reshape(O, 1).astype(jnp.float32)

    # ---- input layout glue: zero-pad, flatten spatial (metadata reshape) ----
    xp = jnp.pad(x.astype(compute_dtype),
                 ((0, 0), (0, 0), (padding, padding), (padding, padding)))
    xf = jnp.pad(xp.reshape(N, C, Hp * Wp), ((0, 0), (0, 0), (0, k - 1)))

    # ---- kernel 1: conv + bias + fused BN partial statistics ----
    conv_kernel = functools.partial(_conv_stats_kernel, k=k, Wp=Wp, Wo=Wo, L=L)
    yconv, stats = pl.pallas_call(
        conv_kernel,
        out_shape=(jax.ShapeDtypeStruct((N, O, L), jnp.float32),
                   jax.ShapeDtypeStruct((N, O, 2), jnp.float32)),
        grid=(N,),
        in_specs=[
            pl.BlockSpec((None, C, Lx), lambda n: (n, 0, 0)),      # one image
            pl.BlockSpec((k * k, O, C), lambda n: (0, 0, 0)),      # weights
            pl.BlockSpec((O, 1), lambda n: (0, 0)),                # conv bias
        ],
        out_specs=(
            pl.BlockSpec((None, O, L), lambda n: (n, 0, 0)),       # conv out
            pl.BlockSpec((None, O, 2), lambda n: (n, 0, 0)),       # stats
        ),
        compiler_params=pltpu.CompilerParams(
            dimension_semantics=("parallel",)),
    )(xf, wr, bias2)

    # ---- BatchNorm batch statistics + folding (tiny per-channel math) ----
    cnt = float(N * Ho * Wo)
    s1 = jnp.sum(stats[:, :, 0], axis=0)                 # (O,)
    s2 = jnp.sum(stats[:, :, 1], axis=0)                 # (O,)
    mean = s1 / cnt
    var = jnp.maximum(s2 / cnt - mean * mean, 0.0)       # biased (BN training)
    invstd = jax.lax.rsqrt(var + eps)
    a = (bn_gamma * invstd * scale).reshape(O, 1).astype(jnp.float32)
    b = ((bn_beta - mean * bn_gamma * invstd) * scale).reshape(O, 1) \
        .astype(jnp.float32)

    # ---- kernel 2: apply folded BN + scale affine (lane-dense elementwise) --
    out_flat = pl.pallas_call(
        _bn_scale_kernel,
        out_shape=jax.ShapeDtypeStruct((N, O, L), x.dtype),
        grid=(N,),
        in_specs=[
            pl.BlockSpec((None, O, L), lambda n: (n, 0, 0)),
            pl.BlockSpec((O, 1), lambda n: (0, 0)),
            pl.BlockSpec((O, 1), lambda n: (0, 0)),
        ],
        out_specs=pl.BlockSpec((None, O, L), lambda n: (n, 0, 0)),
        compiler_params=pltpu.CompilerParams(
            dimension_semantics=("parallel",)),
    )(yconv, a, b)

    # (N, O, Ho*Wp) -> (N, O, Ho, Wp) is a metadata reshape; dropping the
    # (Wp - Wo) junk columns is a cheap slice.  Output is already NCHW.
    return out_flat.reshape(N, O, Ho, Wp)[..., :Wo]


if __name__ == "__main__":
    # Conv2dDecompScaledWithBN(in_channels=4, out_channels=8, kernel_size=3,
    #                          padding=1, args=None)  -> decomp_type='norm'
    N, C, H, W = 2, 4, 16, 16
    O, ks, stride, padding = 8, 3, 1, 1
    eps = 1e-5

    key = jax.random.PRNGKey(0)
    kg, kv, kx = jax.random.split(key, 3)

    # g: normal, row-normalized (args is None -> oblique branch)
    g = jax.random.normal(kg, (O, C), jnp.float32)
    g = g / jnp.sqrt(jnp.sum(g * g, axis=1, keepdims=True))
    # v: normal, normalized per (o, c) over spatial dims ('norm' branch)
    v = jax.random.normal(kv, (O, C, ks, ks), jnp.float32)
    v = v / jnp.sqrt(jnp.sum(v * v, axis=(2, 3), keepdims=True))

    conv_bias = jnp.zeros((O,), jnp.float32)   # nn.init.constant_(bias, 0.0)
    bn_gamma = jnp.ones((O,), jnp.float32)     # BatchNorm2d affine init
    bn_beta = jnp.zeros((O,), jnp.float32)
    scale = jnp.ones((O,), jnp.float32)

    x = jax.random.normal(kx, (N, C, H, W), jnp.float32)

    out = conv2d_decomp_scaled_bn(
        x, v, g, conv_bias, bn_gamma, bn_beta, scale,
        kernel_size=ks, stride=stride, padding=padding, eps=eps)
    out = jax.block_until_ready(out)

    # ---- pure-JAX reference with the same bf16 operand precision as the
    # kernel's matmuls (isolates kernel correctness from input quantization) --
    cd = jnp.bfloat16
    w_ref = (v * g[:, :, None, None]).astype(cd)
    y_ref = jax.lax.conv_general_dilated(
        x.astype(cd), w_ref, window_strides=(stride, stride),
        padding=[(padding, padding), (padding, padding)],
        dimension_numbers=("NCHW", "OIHW", "NCHW"),
        preferred_element_type=jnp.float32)
    y_ref = y_ref + conv_bias[None, :, None, None]
    mean = jnp.mean(y_ref, axis=(0, 2, 3), keepdims=True)
    var = jnp.var(y_ref, axis=(0, 2, 3), keepdims=True)   # biased (BN training)
    y_ref = (y_ref - mean) * jax.lax.rsqrt(var + eps) \
        * bn_gamma[None, :, None, None] + bn_beta[None, :, None, None]
    ref = y_ref * scale[None, :, None, None]

    assert out.shape == (N, O, H, W), out.shape
    max_err = float(jnp.max(jnp.abs(out - ref)))
    assert max_err < 2e-3, max_err
    print("KERNEL_OK")
</pallas_src>

<mosaic_0001>
module attributes {stable_mosaic.version = 11 : i64} {
  func.func @_conv_stats_kernel(%arg0: i32, %arg1: memref<1x4x326xbf16, #tpu.memory_space<vmem>>, %arg2: memref<9x8x4xbf16, #tpu.memory_space<vmem>>, %arg3: memref<8x1xf32, #tpu.memory_space<vmem>>, %arg4: memref<1x8x288xf32, #tpu.memory_space<vmem>>, %arg5: memref<1x8x2xf32, #tpu.memory_space<vmem>>) attributes {dimension_semantics = [#tpu.dimension_semantics<parallel>], iteration_bounds = array<i64: 2>, scalar_prefetch = 0 : i64, scratch_operands = 0 : i64, tpu.core_type = #tpu.core_type<tc>, window_params = [{transform_indices = @transform_0, window_bounds = array<i64: 1, 4, 326>}, {pipeline_mode = #tpu.pipeline_mode<synchronous>, transform_indices = @transform_1, window_bounds = array<i64: 9, 8, 4>}, {pipeline_mode = #tpu.pipeline_mode<synchronous>, transform_indices = @transform_2, window_bounds = array<i64: 8, 1>}, {transform_indices = @transform_3, window_bounds = array<i64: 1, 8, 288>}, {transform_indices = @transform_4, window_bounds = array<i64: 1, 8, 2>}]} {
    %cst = arith.constant 0.000000e+00 : f32
    %0 = vector.broadcast %cst : f32 to vector<8x288xf32>
    %c0 = arith.constant 0 : index
    %c0_0 = arith.constant 0 : index
    %c0_1 = arith.constant 0 : index
    %1 = vector.load %arg2[%c0, %c0_0, %c0_1] : memref<9x8x4xbf16, #tpu.memory_space<vmem>>, vector<1x8x4xbf16>
    %2 = vector.shape_cast %1 : vector<1x8x4xbf16> to vector<8x4xbf16>
    %c0_2 = arith.constant 0 : index
    %c0_3 = arith.constant 0 : index
    %c0_4 = arith.constant 0 : index
    %3 = vector.load %arg1[%c0_2, %c0_3, %c0_4] : memref<1x4x326xbf16, #tpu.memory_space<vmem>>, vector<1x4x288xbf16>
    %4 = vector.shape_cast %3 : vector<1x4x288xbf16> to vector<4x288xbf16>
    %cst_5 = arith.constant dense<0.000000e+00> : vector<8x288xf32>
    %5 = tpu.matmul %2, %4, %cst_5 {dimension_numbers = #tpu.dot_dimension_numbers<[1], [0], [0], [1], [0, 0, 1, 1], [], []>} : vector<8x4xbf16>, vector<4x288xbf16>, vector<8x288xf32> -> vector<8x288xf32>
    %6 = arith.addf %0, %5 : vector<8x288xf32>
    %c1 = arith.constant 1 : index
    %c0_6 = arith.constant 0 : index
    %c0_7 = arith.constant 0 : index
    %7 = vector.load %arg2[%c1, %c0_6, %c0_7] : memref<9x8x4xbf16, #tpu.memory_space<vmem>>, vector<1x8x4xbf16>
    %8 = vector.shape_cast %7 : vector<1x8x4xbf16> to vector<8x4xbf16>
    %c0_8 = arith.constant 0 : index
    %c0_9 = arith.constant 0 : index
    %c1_10 = arith.constant 1 : index
    %9 = vector.load %arg1[%c0_8, %c0_9, %c1_10] : memref<1x4x326xbf16, #tpu.memory_space<vmem>>, vector<1x4x288xbf16>
    %10 = vector.shape_cast %9 : vector<1x4x288xbf16> to vector<4x288xbf16>
    %cst_11 = arith.constant dense<0.000000e+00> : vector<8x288xf32>
    %11 = tpu.matmul %8, %10, %cst_11 {dimension_numbers = #tpu.dot_dimension_numbers<[1], [0], [0], [1], [0, 0, 1, 1], [], []>} : vector<8x4xbf16>, vector<4x288xbf16>, vector<8x288xf32> -> vector<8x288xf32>
    %12 = arith.addf %6, %11 : vector<8x288xf32>
    %c2 = arith.constant 2 : index
    %c0_12 = arith.constant 0 : index
    %c0_13 = arith.constant 0 : index
    %13 = vector.load %arg2[%c2, %c0_12, %c0_13] : memref<9x8x4xbf16, #tpu.memory_space<vmem>>, vector<1x8x4xbf16>
    %14 = vector.shape_cast %13 : vector<1x8x4xbf16> to vector<8x4xbf16>
    %c0_14 = arith.constant 0 : index
    %c0_15 = arith.constant 0 : index
    %c2_16 = arith.constant 2 : index
    %15 = vector.load %arg1[%c0_14, %c0_15, %c2_16] : memref<1x4x326xbf16, #tpu.memory_space<vmem>>, vector<1x4x288xbf16>
    %16 = vector.shape_cast %15 : vector<1x4x288xbf16> to vector<4x288xbf16>
    %cst_17 = arith.constant dense<0.000000e+00> : vector<8x288xf32>
    %17 = tpu.matmul %14, %16, %cst_17 {dimension_numbers = #tpu.dot_dimension_numbers<[1], [0], [0], [1], [0, 0, 1, 1], [], []>} : vector<8x4xbf16>, vector<4x288xbf16>, vector<8x288xf32> -> vector<8x288xf32>
    %18 = arith.addf %12, %17 : vector<8x288xf32>
    %c3 = arith.constant 3 : index
    %c0_18 = arith.constant 0 : index
    %c0_19 = arith.constant 0 : index
    %19 = vector.load %arg2[%c3, %c0_18, %c0_19] : memref<9x8x4xbf16, #tpu.memory_space<vmem>>, vector<1x8x4xbf16>
    %20 = vector.shape_cast %19 : vector<1x8x4xbf16> to vector<8x4xbf16>
    %c0_20 = arith.constant 0 : index
    %c0_21 = arith.constant 0 : index
    %c18 = arith.constant 18 : index
    %21 = vector.load %arg1[%c0_20, %c0_21, %c18] : memref<1x4x326xbf16, #tpu.memory_space<vmem>>, vector<1x4x288xbf16>
    %22 = vector.shape_cast %21 : vector<1x4x288xbf16> to vector<4x288xbf16>
    %cst_22 = arith.constant dense<0.000000e+00> : vector<8x288xf32>
    %23 = tpu.matmul %20, %22, %cst_22 {dimension_numbers = #tpu.dot_dimension_numbers<[1], [0], [0], [1], [0, 0, 1, 1], [], []>} : vector<8x4xbf16>, vector<4x288xbf16>, vector<8x288xf32> -> vector<8x288xf32>
    %24 = arith.addf %18, %23 : vector<8x288xf32>
    %c4 = arith.constant 4 : index
    %c0_23 = arith.constant 0 : index
    %c0_24 = arith.constant 0 : index
    %25 = vector.load %arg2[%c4, %c0_23, %c0_24] : memref<9x8x4xbf16, #tpu.memory_space<vmem>>, vector<1x8x4xbf16>
    %26 = vector.shape_cast %25 : vector<1x8x4xbf16> to vector<8x4xbf16>
    %c0_25 = arith.constant 0 : index
    %c0_26 = arith.constant 0 : index
    %c19 = arith.constant 19 : index
    %27 = vector.load %arg1[%c0_25, %c0_26, %c19] : memref<1x4x326xbf16, #tpu.memory_space<vmem>>, vector<1x4x288xbf16>
    %28 = vector.shape_cast %27 : vector<1x4x288xbf16> to vector<4x288xbf16>
    %cst_27 = arith.constant dense<0.000000e+00> : vector<8x288xf32>
    %29 = tpu.matmul %26, %28, %cst_27 {dimension_numbers = #tpu.dot_dimension_numbers<[1], [0], [0], [1], [0, 0, 1, 1], [], []>} : vector<8x4xbf16>, vector<4x288xbf16>, vector<8x288xf32> -> vector<8x288xf32>
    %30 = arith.addf %24, %29 : vector<8x288xf32>
    %c5 = arith.constant 5 : index
    %c0_28 = arith.constant 0 : index
    %c0_29 = arith.constant 0 : index
    %31 = vector.load %arg2[%c5, %c0_28, %c0_29] : memref<9x8x4xbf16, #tpu.memory_space<vmem>>, vector<1x8x4xbf16>
    %32 = vector.shape_cast %31 : vector<1x8x4xbf16> to vector<8x4xbf16>
    %c0_30 = arith.constant 0 : index
    %c0_31 = arith.constant 0 : index
    %c20 = arith.constant 20 : index
    %33 = vector.load %arg1[%c0_30, %c0_31, %c20] : memref<1x4x326xbf16, #tpu.memory_space<vmem>>, vector<1x4x288xbf16>
    %34 = vector.shape_cast %33 : vector<1x4x288xbf16> to vector<4x288xbf16>
    %cst_32 = arith.constant dense<0.000000e+00> : vector<8x288xf32>
    %35 = tpu.matmul %32, %34, %cst_32 {dimension_numbers = #tpu.dot_dimension_numbers<[1], [0], [0], [1], [0, 0, 1, 1], [], []>} : vector<8x4xbf16>, vector<4x288xbf16>, vector<8x288xf32> -> vector<8x288xf32>
    %36 = arith.addf %30, %35 : vector<8x288xf32>
    %c6 = arith.constant 6 : index
    %c0_33 = arith.constant 0 : index
    %c0_34 = arith.constant 0 : index
    %37 = vector.load %arg2[%c6, %c0_33, %c0_34] : memref<9x8x4xbf16, #tpu.memory_space<vmem>>, vector<1x8x4xbf16>
    %38 = vector.shape_cast %37 : vector<1x8x4xbf16> to vector<8x4xbf16>
    %c0_35 = arith.constant 0 : index
    %c0_36 = arith.constant 0 : index
    %c36 = arith.constant 36 : index
    %39 = vector.load %arg1[%c0_35, %c0_36, %c36] : memref<1x4x326xbf16, #tpu.memory_space<vmem>>, vector<1x4x288xbf16>
    %40 = vector.shape_cast %39 : vector<1x4x288xbf16> to vector<4x288xbf16>
    %cst_37 = arith.constant dense<0.000000e+00> : vector<8x288xf32>
    %41 = tpu.matmul %38, %40, %cst_37 {dimension_numbers = #tpu.dot_dimension_numbers<[1], [0], [0], [1], [0, 0, 1, 1], [], []>} : vector<8x4xbf16>, vector<4x288xbf16>, vector<8x288xf32> -> vector<8x288xf32>
    %42 = arith.addf %36, %41 : vector<8x288xf32>
    %c7 = arith.constant 7 : index
    %c0_38 = arith.constant 0 : index
    %c0_39 = arith.constant 0 : index
    %43 = vector.load %arg2[%c7, %c0_38, %c0_39] : memref<9x8x4xbf16, #tpu.memory_space<vmem>>, vector<1x8x4xbf16>
    %44 = vector.shape_cast %43 : vector<1x8x4xbf16> to vector<8x4xbf16>
    %c0_40 = arith.constant 0 : index
    %c0_41 = arith.constant 0 : index
    %c37 = arith.constant 37 : index
    %45 = vector.load %arg1[%c0_40, %c0_41, %c37] : memref<1x4x326xbf16, #tpu.memory_space<vmem>>, vector<1x4x288xbf16>
    %46 = vector.shape_cast %45 : vector<1x4x288xbf16> to vector<4x288xbf16>
    %cst_42 = arith.constant dense<0.000000e+00> : vector<8x288xf32>
    %47 = tpu.matmul %44, %46, %cst_42 {dimension_numbers = #tpu.dot_dimension_numbers<[1], [0], [0], [1], [0, 0, 1, 1], [], []>} : vector<8x4xbf16>, vector<4x288xbf16>, vector<8x288xf32> -> vector<8x288xf32>
    %48 = arith.addf %42, %47 : vector<8x288xf32>
    %c8 = arith.constant 8 : index
    %c0_43 = arith.constant 0 : index
    %c0_44 = arith.constant 0 : index
    %49 = vector.load %arg2[%c8, %c0_43, %c0_44] : memref<9x8x4xbf16, #tpu.memory_space<vmem>>, vector<1x8x4xbf16>
    %50 = vector.shape_cast %49 : vector<1x8x4xbf16> to vector<8x4xbf16>
    %c0_45 = arith.constant 0 : index
    %c0_46 = arith.constant 0 : index
    %c38 = arith.constant 38 : index
    %51 = vector.load %arg1[%c0_45, %c0_46, %c38] : memref<1x4x326xbf16, #tpu.memory_space<vmem>>, vector<1x4x288xbf16>
    %52 = vector.shape_cast %51 : vector<1x4x288xbf16> to vector<4x288xbf16>
    %cst_47 = arith.constant dense<0.000000e+00> : vector<8x288xf32>
    %53 = tpu.matmul %50, %52, %cst_47 {dimension_numbers = #tpu.dot_dimension_numbers<[1], [0], [0], [1], [0, 0, 1, 1], [], []>} : vector<8x4xbf16>, vector<4x288xbf16>, vector<8x288xf32> -> vector<8x288xf32>
    %54 = arith.addf %48, %53 : vector<8x288xf32>
    %c0_48 = arith.constant 0 : index
    %c0_49 = arith.constant 0 : index
    %55 = vector.load %arg3[%c0_48, %c0_49] : memref<8x1xf32, #tpu.memory_space<vmem>>, vector<8x1xf32>
    %56 = vector.broadcast %55 : vector<8x1xf32> to vector<8x288xf32>
    %57 = arith.addf %54, %56 : vector<8x288xf32>
    %c0_50 = arith.constant 0 : index
    %c0_51 = arith.constant 0 : index
    %c0_52 = arith.constant 0 : index
    %58 = vector.load %arg4[%c0_50, %c0_51, %c0_52] : memref<1x8x288xf32, #tpu.memory_space<vmem>>, vector<1x8x288xf32>
    %59 = vector.shape_cast %58 : vector<1x8x288xf32> to vector<8x288xf32>
    %60 = vector.shape_cast %57 : vector<8x288xf32> to vector<1x8x288xf32>
    tpu.vector_store %arg4[%c0_50, %c0_51, %c0_52], %60 {strides = array<i32>} : memref<1x8x288xf32, #tpu.memory_space<vmem>>, vector<1x8x288xf32>,
    %61 = tpu.iota {dimensions = array<i32: 1>} : vector<1x288xi32>
    %c18_i32 = arith.constant 18 : i32
    %c0_i32 = arith.constant 0 : i32
    %62 = arith.cmpi eq, %c18_i32, %c0_i32 : i32
    %c1_i32 = arith.constant 1 : i32
    %63 = arith.select %62, %c1_i32, %c18_i32 : i32
    %64 = vector.broadcast %63 : i32 to vector<1x288xi32>
    %65 = arith.remsi %61, %64 : vector<1x288xi32>
    %c0_i32_53 = arith.constant 0 : i32
    %66 = vector.broadcast %c0_i32_53 : i32 to vector<1x288xi32>
    %67 = arith.cmpi ne, %65, %66 : vector<1x288xi32>
    %c0_i32_54 = arith.constant 0 : i32
    %68 = vector.broadcast %c0_i32_54 : i32 to vector<1x288xi32>
    %69 = arith.cmpi slt, %65, %68 : vector<1x288xi32>
    %c0_i32_55 = arith.constant 0 : i32
    %70 = arith.cmpi slt, %63, %c0_i32_55 : i32
    %71 = vector.broadcast %70 : i1 to vector<1x288xi1>
    %72 = vector.broadcast %71 : vector<1x288xi1> to vector<1x288xi1>
    %73 = arith.xori %69, %72 : vector<1x288xi1>
    %74 = arith.andi %73, %67 : vector<1x288xi1>
    %75 = vector.broadcast %63 : i32 to vector<1x288xi32>
    %76 = arith.addi %65, %75 : vector<1x288xi32>
    %77 = arith.select %74, %76, %65 : vector<1x288xi1>, vector<1x288xi32>
    %c16_i32 = arith.constant 16 : i32
    %78 = vector.broadcast %c16_i32 : i32 to vector<1x288xi32>
    %79 = arith.cmpi slt, %77, %78 : vector<1x288xi32>
    %cst_56 = arith.constant 0.000000e+00 : f32
    %80 = vector.shape_cast %79 : vector<1x288xi1> to vector<1x288xi1>
    %81 = vector.broadcast %80 : vector<1x288xi1> to vector<8x288xi1>
    %82 = vector.broadcast %cst_56 : f32 to vector<8x288xf32>
    %83 = arith.select %81, %57, %82 : vector<8x288xi1>, vector<8x288xf32>
    %cst_57 = arith.constant dense<0.000000e+00> : vector<8xf32>
    %84 = vector.multi_reduction <add>, %83, %cst_57 [1] : vector<8x288xf32> to vector<8xf32>
    %85 = vector.shape_cast %84 : vector<8xf32> to vector<8x1xf32>
    %c0_58 = arith.constant 0 : index
    %c0_59 = arith.constant 0 : index
    %c0_60 = arith.constant 0 : index
    %86 = vector.load %arg5[%c0_58, %c0_59, %c0_60] : memref<1x8x2xf32, #tpu.memory_space<vmem>>, vector<1x8x1xf32>
    %87 = vector.shape_cast %86 : vector<1x8x1xf32> to vector<8x1xf32>
    %88 = vector.shape_cast %85 : vector<8x1xf32> to vector<1x8x1xf32>
    tpu.vector_store %arg5[%c0_58, %c0_59, %c0_60], %88 {strides = array<i32>} : memref<1x8x2xf32, #tpu.memory_space<vmem>>, vector<1x8x1xf32>,
    %89 = arith.mulf %83, %83 : vector<8x288xf32>
    %cst_61 = arith.constant dense<0.000000e+00> : vector<8xf32>
    %90 = vector.multi_reduction <add>, %89, %cst_61 [1] : vector<8x288xf32> to vector<8xf32>
    %91 = vector.shape_cast %90 : vector<8xf32> to vector<8x1xf32>
    %c0_62 = arith.constant 0 : index
    %c0_63 = arith.constant 0 : index
    %c1_64 = arith.constant 1 : index
    %92 = vector.load %arg5[%c0_62, %c0_63, %c1_64] : memref<1x8x2xf32, #tpu.memory_space<vmem>>, vector<1x8x1xf32>
    %93 = vector.shape_cast %92 : vector<1x8x1xf32> to vector<8x1xf32>
    %94 = vector.shape_cast %91 : vector<8x1xf32> to vector<1x8x1xf32>
    tpu.vector_store %arg5[%c0_62, %c0_63, %c1_64], %94 {strides = array<i32>} : memref<1x8x2xf32, #tpu.memory_space<vmem>>, vector<1x8x1xf32>,
    return
  }
  func.func @transform_0(%arg0: i32) -> (i32, i32, i32) {
    %c0_i32 = arith.constant 0 : i32
    %c0_i32_0 = arith.constant 0 : i32
    %c0_i32_1 = arith.constant 0 : i32
    return %arg0, %c0_i32, %c0_i32_0 : i32, i32, i32
  }
  func.func @transform_1(%arg0: i32) -> (i32, i32, i32) {
    %c0_i32 = arith.constant 0 : i32
    %c0_i32_0 = arith.constant 0 : i32
    %c0_i32_1 = arith.constant 0 : i32
    %c0_i32_2 = arith.constant 0 : i32
    return %c0_i32, %c0_i32_0, %c0_i32_1 : i32, i32, i32
  }
  func.func @transform_2(%arg0: i32) -> (i32, i32) {
    %c0_i32 = arith.constant 0 : i32
    %c0_i32_0 = arith.constant 0 : i32
    %c0_i32_1 = arith.constant 0 : i32
    return %c0_i32, %c0_i32_0 : i32, i32
  }
  func.func @transform_3(%arg0: i32) -> (i32, i32, i32) {
    %c0_i32 = arith.constant 0 : i32
    %c0_i32_0 = arith.constant 0 : i32
    %c0_i32_1 = arith.constant 0 : i32
    return %arg0, %c0_i32, %c0_i32_0 : i32, i32, i32
  }
  func.func @transform_4(%arg0: i32) -> (i32, i32, i32) {
    %c0_i32 = arith.constant 0 : i32
    %c0_i32_0 = arith.constant 0 : i32
    %c0_i32_1 = arith.constant 0 : i32
    return %arg0, %c0_i32, %c0_i32_0 : i32, i32, i32
  }
}

</mosaic_0001>

<llo_original>
// kernel: tpu_custom_call.1
$region0: #{tpu_custom_call.1}
  #allocation0 [shape = 'u32[]', space=smem, size = 0x4, offset = 0x4, fixed_abs, tag = 'smem constant byte address 0x4 - core index']
  #allocation1 [shape = 'u32[144,128]{1,0:T(1,128)}', space=vmem, size = 0x12000, scoped, tag = 'internal scratch']
  %s0 = inlined_call_operand.vmem [shape: bf16[2,4,326], index: 0, kind: input, shape index: {}]
  %s1 = inlined_call_operand.vmem [shape: bf16[9,8,4], index: 1, kind: input, shape index: {}]
  %s2 = inlined_call_operand.vmem [shape: f32[8,1], index: 2, kind: input, shape index: {}]
  %s3 = inlined_call_operand.hbm [shape: f32[2,8,288], index: 3, kind: output, shape index: {0}]
  %s4 = inlined_call_operand.vmem [shape: f32[2,8,2], index: 4, kind: output, shape index: {1}]
  %5 = xla_tuple %s3, %s4
  %s6 = sld [smem:[#allocation0]]
  $region53: #{tpu_custom_call.1} parent=0
    _
  %s8 = ssub.s32 1, %s6
  %s9 = scalar_select 0, %s8, %s6
  $region1: #{tpu_custom_call.1} parent=0
    #allocation2 [shape = 'u8[24576]{0}', space=vmem, size = 0x6000, scoped, tag = 'output window, operand 0']
    #allocation3 [shape = 's32[2]{0}', space=sflag, size = 0x8, scoped, tag = 'scoped memory for tpu_custom_call.1']
    %10 = vsyncpa [#allocation3], 0
    %s11 = scalar_lea.sflag [#allocation3], 1
    %12 = vsyncpa %s11, 0
    loop: start=0, step=1, limit=4
    $region2: #{tpu_custom_call.1} parent=1 // loop_pre_header
      _
    $region3: #{tpu_custom_call.1} parent=1 // loop_header
      %s14 = sphi 0, %s18
      %p15 = scmp.ge.s32.totalorder %s14, 4
      %s24 = sphi 0, %s26
      %s27 = sphi 0, %s24
      %s28 = sphi 0, %s27
      %s44 = sphi 0, %s28
      %s48 = sphi 0, %s48
      %s50 = sphi 0, %s48
      %s51 = sphi 0, %s50
      %s65 = sphi 0, %s51
      %s69 = sphi 0, %s69
      %s71 = sphi 0, %s69
      %s72 = sphi 0, %s71
      %s86 = sphi 0, %s72
      %s92 = sphi 0, %s94
      %s95 = sphi 0, %s92
      %s96 = sphi 0, %s95
      %s112 = sphi 0, %s96
      %s118 = sphi 0, %s120
      %s121 = sphi 0, %s118
      %s122 = sphi 0, %s121
      %s138 = sphi 0, %s122
    $region4: #{tpu_custom_call.1} parent=1 // loop_header_branch
      %17 = sbr.rel (%p15) target = $region8
    $region5: #{tpu_custom_call.1} parent=1 // loop_body
      %s19 = ssub.s32 %s14, 1
      %s20 = ssub.s32 %s14, 2
      %s21 = sadd.s32 %s14, 1
      %s22 = ssub.s32 %s14, %s21
      %p23 = scmp.eq.s32.totalorder %s22, 0
      %s25 = sadd.s32 %s24, 1
      %s26 = scalar_select %p23, %s24, %s25
      %p29 = pneg %p23
      %p30 = scmp.eq.s32.totalorder %s14, 1
      %p31 = por %p29, %p30
      %p32 = scmp.ne.s32.totalorder %s24, %s27
      %p33 = scmp.eq.s32.totalorder %s14, 0
      %p34 = por %p32, %p33
      %p35 = scmp.ne.s32.totalorder %s24, %s27
      %p36 = scmp.eq.s32.totalorder %s19, 1
      %p37 = por %p35, %p36
      %p38 = scmp.ne.s32.totalorder %s27, %s28
      %p39 = scmp.eq.s32.totalorder %s19, 0
      %p40 = por %p38, %p39
      %p41 = scmp.ne.s32.totalorder %s27, %s28
      %p42 = scmp.eq.s32.totalorder %s20, 1
      %p43 = por %p41, %p42
      %p45 = scmp.ne.s32.totalorder %s28, %s44
      %p46 = scmp.eq.s32.totalorder %s20, 0
      %p47 = por %p45, %p46
      %s49 = sadd.s32 %s48, 1
      %p52 = scmp.eq.s32.totalorder %s14, 1
      %p53 = scmp.ne.s32.totalorder %s48, %s50
      %p54 = scmp.eq.s32.totalorder %s14, 0
      %p55 = por %p53, %p54
      %p56 = scmp.ne.s32.totalorder %s48, %s50
      %p57 = scmp.eq.s32.totalorder %s19, 1
      %p58 = por %p56, %p57
      %p59 = scmp.ne.s32.totalorder %s50, %s51
      %p60 = scmp.eq.s32.totalorder %s19, 0
      %p61 = por %p59, %p60
      %p62 = scmp.ne.s32.totalorder %s50, %s51
      %p63 = scmp.eq.s32.totalorder %s20, 1
      %p64 = por %p62, %p63
      %p66 = scmp.ne.s32.totalorder %s51, %s65
      %p67 = scmp.eq.s32.totalorder %s20, 0
      %p68 = por %p66, %p67
      %s70 = sadd.s32 %s69, 1
      %p73 = scmp.eq.s32.totalorder %s14, 1
      %p74 = scmp.ne.s32.totalorder %s69, %s71
      %p75 = scmp.eq.s32.totalorder %s14, 0
      %p76 = por %p74, %p75
      %p77 = scmp.ne.s32.totalorder %s69, %s71
      %p78 = scmp.eq.s32.totalorder %s19, 1
      %p79 = por %p77, %p78
      %p80 = scmp.ne.s32.totalorder %s71, %s72
      %p81 = scmp.eq.s32.totalorder %s19, 0
      %p82 = por %p80, %p81
      %p83 = scmp.ne.s32.totalorder %s71, %s72
      %p84 = scmp.eq.s32.totalorder %s20, 1
      %p85 = por %p83, %p84
      %p87 = scmp.ne.s32.totalorder %s72, %s86
      %p88 = scmp.eq.s32.totalorder %s20, 0
      %p89 = por %p87, %p88
      %s90 = ssub.s32 %s14, %s21
      %p91 = scmp.eq.s32.totalorder %s90, 0
      %s93 = sadd.s32 %s92, 1
      %s94 = scalar_select %p91, %s92, %s93
      %p97 = pneg %p91
      %p98 = scmp.eq.s32.totalorder %s14, 1
      %p99 = por %p97, %p98
      %p100 = scmp.ne.s32.totalorder %s92, %s95
      %p101 = scmp.eq.s32.totalorder %s14, 0
      %p102 = por %p100, %p101
      %p103 = scmp.ne.s32.totalorder %s92, %s95
      %p104 = scmp.eq.s32.totalorder %s19, 1
      %p105 = por %p103, %p104
      %p106 = scmp.ne.s32.totalorder %s95, %s96
      %p107 = scmp.eq.s32.totalorder %s19, 0
      %p108 = por %p106, %p107
      %p109 = scmp.ne.s32.totalorder %s95, %s96
      %p110 = scmp.eq.s32.totalorder %s20, 1
      %p111 = por %p109, %p110
      %p113 = scmp.ne.s32.totalorder %s96, %s112
      %p114 = scmp.eq.s32.totalorder %s20, 0
      %p115 = por %p113, %p114
      %s116 = ssub.s32 %s14, %s21
      %p117 = scmp.eq.s32.totalorder %s116, 0
      %s119 = sadd.s32 %s118, 1
      %s120 = scalar_select %p117, %s118, %s119
      %p123 = pneg %p117
      %p124 = scmp.eq.s32.totalorder %s14, 1
      %p125 = por %p123, %p124
      %p126 = scmp.ne.s32.totalorder %s118, %s121
      %p127 = scmp.eq.s32.totalorder %s14, 0
      %p128 = por %p126, %p127
      %p129 = scmp.ne.s32.totalorder %s118, %s121
      %p130 = scmp.eq.s32.totalorder %s19, 1
      %p131 = por %p129, %p130
      %p132 = scmp.ne.s32.totalorder %s121, %s122
      %p133 = scmp.eq.s32.totalorder %s19, 0
      %p134 = por %p132, %p133
      %p135 = scmp.ne.s32.totalorder %s121, %s122
      %p136 = scmp.eq.s32.totalorder %s20, 1
      %p137 = por %p135, %p136
      %p139 = scmp.ne.s32.totalorder %s122, %s138
      %p140 = scmp.eq.s32.totalorder %s20, 0
      %p141 = por %p139, %p140
      %p142 = scmp.le.s32.totalorder 1, %s14
      %p143 = scmp.lt.s32.totalorder %s14, 3
      %p144 = pnand %p142, %p143
      %p145 = pneg %p144
      // Predicated region
      $region9: #{tpu_custom_call.1} parent=5 // pred_check
        _
      $region10: #{tpu_custom_call.1} parent=5 // pred_check_branch
        %147 = sbr.rel (%p144) target = $region12
      $region11: #{tpu_custom_call.1} parent=5 // pred_region
        %s148 = ssub.s32 %s14, 1
        // Predicated region
        $region13: #{tpu_custom_call.1} parent=11 // pred_check
          %p149 = pneg %p61
        $region14: #{tpu_custom_call.1} parent=11 // pred_check_branch
          %151 = sbr.rel (%p149) target = $region16
        $region15: #{tpu_custom_call.1} parent=11 // pred_region
          _
        $region16: #{tpu_custom_call.1} parent=11 // pred_fallthru
          _
        // Predicated region
        $region17: #{tpu_custom_call.1} parent=11 // pred_check
          %p152 = pneg %p82
        $region18: #{tpu_custom_call.1} parent=11 // pred_check_branch
          %154 = sbr.rel (%p152) target = $region20
        $region19: #{tpu_custom_call.1} parent=11 // pred_region
          _
        $region20: #{tpu_custom_call.1} parent=11 // pred_fallthru
          _
      $region12: #{tpu_custom_call.1} parent=5 // pred_fallthru
        _
      %p155 = scmp.lt.s32.totalorder %s14, 2
      // Predicated region
      $region21: #{tpu_custom_call.1} parent=5 // pred_check
        %p156 = pneg %p155
      $region22: #{tpu_custom_call.1} parent=5 // pred_check_branch
        %158 = sbr.rel (%p156) target = $region24
      $region23: #{tpu_custom_call.1} parent=5 // pred_region
        // Predicated region
        $region25: #{tpu_custom_call.1} parent=23 // pred_check
          %p159 = pneg %p34
        $region26: #{tpu_custom_call.1} parent=23 // pred_check_branch
          %161 = sbr.rel (%p159) target = $region28
        $region27: #{tpu_custom_call.1} parent=23 // pred_region
          %p162 = scmp.lt.s32.totalorder %s14, 1
          %s163 = scalar_select %p162, %s14, 1
          %s164 = smul.addr %s163, 3
          %s165 = smul.addr %s164, 2
          %s166 = scalar_lea.vmem %s0, %s165
        $region28: #{tpu_custom_call.1} parent=23 // pred_fallthru
          _
      $region24: #{tpu_custom_call.1} parent=5 // pred_fallthru
        _
      %p167 = scmp.le.s32.totalorder 1, %s14
      %p168 = scmp.lt.s32.totalorder %s14, 3
      %p169 = pnand %p167, %p168
      %p170 = pneg %p169
      // Predicated region
      $region29: #{tpu_custom_call.1} parent=5 // pred_check
        _
      $region30: #{tpu_custom_call.1} parent=5 // pred_check_branch
        %172 = sbr.rel (%p169) target = $region32
      $region31: #{tpu_custom_call.1} parent=5 // pred_region
        %s173 = ssub.s32 %s14, 1
        %p174 = scmp.lt.s32.totalorder %s19, 1
        %s175 = scalar_select %p174, %s19, 1
        %s176 = smul.addr %s175, 3
        %s177 = smul.addr %s176, 2
        %s178 = scalar_lea.vmem %s0, %s177
        %p179 = pneg %p40
        %p180 = pneg %p37
        %p181 = pneg %p61
        %p182 = pneg %p58
        %p183 = pneg %p82
        %p184 = pneg %p79
        %p185 = pneg %p108
        %p186 = pneg %p105
        %s187 = sand.u32 %s95, 1
        %s188 = scalar_lea.sflag [#allocation3], %s187
        %s189 = sand.u32 %s95, 1
        %s190 = smul.addr %s189, 24
        %s191 = scalar_lea.vmem [#allocation2], %s190
        %p192 = pneg %p134
        %p193 = pneg %p131
        %p194 = scmp.lt.s32.totalorder %s19, 1
        %s195 = scalar_select %p194, %s19, 1
        %s196 = smul.addr %s195, 8
        %s197 = scalar_lea.vmem %s4, %s196
        %p198 = scmp.lt.s32.totalorder %s19, 1
        %s199 = scalar_select %p198, %s19, 1
        %s200 = smul.addr %s199, 3
        %s201 = smul.addr %s200, 2
        %s202 = scalar_lea.vmem %s0, %s201
        %p203 = scmp.lt.s32.totalorder %s19, 1
        %s204 = scalar_select %p203, %s19, 1
        %s205 = smul.addr %s204, 8
        %s206 = scalar_lea.vmem %s4, %s205
        %v208 = vld [vmem:[%s1] sm:$0xf]
        %v209 = vld [vmem:[%s202] sm:$0x3f]
        %s210 = scalar_lea.vmem %s1, 4
        %v211 = vld [vmem:[%s210] sm:$0xf]
        %v213 = vcombine.high %v209, %v209
        %v215 = vunpack.c.l.s4 1983009808
        %v216 = vunpack.c.0.s8 %v215
        %v217 = vlaneseq
        %v218 = vshrl.u32 %v217, 7
        %v219 = vsub.s32 %v216, %v218
        %v220 = vrot.slane %v209, %v219
        %v222 = vunpack.c.l.s4 1983009808
        %v223 = vunpack.c.0.s8 %v222
        %v224 = vlaneseq
        %v225 = vshrl.u32 %v224, 7
        %v226 = vsub.s32 %v223, %v225
        %v227 = vrot.slane %v213, %v226
        %v228 = vcombine.high %v220, %v220
        %229 = vrot.lane.b32.xlu0 %v220, 127
        %v230 = vpop.permute.xlu0 %229
        %231 = vrot.lane.b32.xlu0 %v228, 127
        %v232 = vpop.permute.xlu0 %231
        %233 = vrot.lane.b32.xlu0 %v227, 127
        %v234 = vpop.permute.xlu0 %233
        %vm235 = vcmask 1039360
        %v236 = vsel %vm235, %v230, %v232
        %v237 = vsel %vm235, %v232, %v234
        %vm238 = vcmask 31744
        %v240 = vsel %vm238, %v211, 0
        %vm242 = vcmask 1041408
        %v244 = vsel %vm242, %v236, 0
        %v247 = vsel %vm242, %v237, 0
        %v250 = vsel %vm242, %v234, 0
        %252 = vmatprep.subr.bf16.mxu0 %v247
        %253 = vmatpush1.bf16.msra.mxu0 %v244
        %254 = vmatprep.subr.bf16.mxu0 0
        %255 = vmatpush1.bf16.msra.mxu0 0
        %256 = vmatprep.subr.bf16.mxu0 0
        %257 = vmatpush1.bf16.msra.mxu0 0
        %258 = vmatprep.subr.bf16.mxu0 0
        %259 = vmatpush1.bf16.msra.mxu0 0
        %260 = vmatprep.subr.bf16.mxu0 0
        %261 = vmatpush1.bf16.msra.mxu0 0
        %262 = vmatprep.subr.bf16.mxu0 0
        %263 = vmatpush1.bf16.msra.mxu0 0
        %264 = vmatprep.subr.bf16.mxu0 0
        %265 = vmatpush1.bf16.msra.mxu0 0
        %266 = vmatprep.subr.bf16.mxu0 0
        %267 = vmatpush1.bf16.msra.mxu0 0
        %268 = vmatprep.subr.bf16.mxu0 0
        %269 = vmatpush1.bf16.msra.mxu0 0
        %270 = vmatprep.subr.bf16.mxu0 0
        %271 = vmatpush1.bf16.msra.mxu0 0
        %272 = vmatprep.subr.bf16.mxu0 0
        %273 = vmatpush1.bf16.msra.mxu0 0
        %274 = vmatprep.subr.bf16.mxu0 0
        %275 = vmatpush1.bf16.msra.mxu0 0
        %276 = vmatprep.subr.bf16.mxu0 0
        %277 = vmatpush1.bf16.msra.mxu0 0
        %278 = vmatprep.subr.bf16.mxu0 0
        %279 = vmatpush1.bf16.msra.mxu0 0
        %280 = vmatprep.subr.bf16.mxu0 0
        %281 = vmatpush1.bf16.msra.mxu0 0
        %282 = vmatprep.subr.bf16.mxu0 0
        %283 = vmatpush1.bf16.msra.mxu0 0
        %284 = vmatprep.mubr.bf16.mxu0 0
        %285 = vmatmul.mubr.bf16.gmra.mrb[0].mxu0 %v240
        %v286 = vpop.f32.mrb[0].mxu0
        %v287 = vadd.f32 0.0, %v286
        %v288 = vpop.f32.mrb[0].mxu0
        %v289 = vadd.f32 0.0, %v288
        %v290 = vpop.f32.mrb[0].mxu0
        %v291 = vpop.f32.mrb[0].mxu0
        %292 = vdwg.mxu0
        %293 = vmatprep.subr.bf16.mxu0 0
        %294 = vmatpush1.bf16.msra.mxu0 %v250
        %295 = vmatprep.subr.bf16.mxu0 0
        %296 = vmatpush1.bf16.msra.mxu0 0
        %297 = vmatprep.subr.bf16.mxu0 0
        %298 = vmatpush1.bf16.msra.mxu0 0
        %299 = vmatprep.subr.bf16.mxu0 0
        %300 = vmatpush1.bf16.msra.mxu0 0
        %301 = vmatprep.subr.bf16.mxu0 0
        %302 = vmatpush1.bf16.msra.mxu0 0
        %303 = vmatprep.subr.bf16.mxu0 0
        %304 = vmatpush1.bf16.msra.mxu0 0
        %305 = vmatprep.subr.bf16.mxu0 0
        %306 = vmatpush1.bf16.msra.mxu0 0
        %307 = vmatprep.subr.bf16.mxu0 0
        %308 = vmatpush1.bf16.msra.mxu0 0
        %309 = vmatprep.subr.bf16.mxu0 0
        %310 = vmatpush1.bf16.msra.mxu0 0
        %311 = vmatprep.subr.bf16.mxu0 0
        %312 = vmatpush1.bf16.msra.mxu0 0
        %313 = vmatprep.subr.bf16.mxu0 0
        %314 = vmatpush1.bf16.msra.mxu0 0
        %315 = vmatprep.subr.bf16.mxu0 0
        %316 = vmatpush1.bf16.msra.mxu0 0
        %317 = vmatprep.subr.bf16.mxu0 0
        %318 = vmatpush1.bf16.msra.mxu0 0
        %319 = vmatprep.subr.bf16.mxu0 0
        %320 = vmatpush1.bf16.msra.mxu0 0
        %321 = vmatprep.subr.bf16.mxu0 0
        %322 = vmatpush1.bf16.msra.mxu0 0
        %323 = vmatprep.subr.bf16.mxu0 0
        %324 = vmatpush1.bf16.msra.mxu0 0
        %325 = vmatprep.mubr.bf16.mxu0 0
        %326 = vmatmul.mubr.bf16.gmra.mrb[0].mxu0 %v240
        %v327 = vpop.f32.mrb[0].mxu0
        %v328 = vadd.f32 0.0, %v327
        %v329 = vpop.f32.mrb[0].mxu0
        %v330 = vpop.f32.mrb[0].mxu0
        %v331 = vpop.f32.mrb[0].mxu0
        %332 = vdwg.mxu0
        %v334 = vsel %vm238, %v208, 0
        %v337 = vsel %vm242, %v220, 0
        %v340 = vsel %vm242, %v228, 0
        %v343 = vsel %vm242, %v227, 0
        %345 = vmatprep.subr.bf16.mxu0 %v340
        %346 = vmatpush1.bf16.msra.mxu0 %v337
        %347 = vmatprep.subr.bf16.mxu0 0
        %348 = vmatpush1.bf16.msra.mxu0 0
        %349 = vmatprep.subr.bf16.mxu0 0
        %350 = vmatpush1.bf16.msra.mxu0 0
        %351 = vmatprep.subr.bf16.mxu0 0
        %352 = vmatpush1.bf16.msra.mxu0 0
        %353 = vmatprep.subr.bf16.mxu0 0
        %354 = vmatpush1.bf16.msra.mxu0 0
        %355 = vmatprep.subr.bf16.mxu0 0
        %356 = vmatpush1.bf16.msra.mxu0 0
        %357 = vmatprep.subr.bf16.mxu0 0
        %358 = vmatpush1.bf16.msra.mxu0 0
        %359 = vmatprep.subr.bf16.mxu0 0
        %360 = vmatpush1.bf16.msra.mxu0 0
        %361 = vmatprep.subr.bf16.mxu0 0
        %362 = vmatpush1.bf16.msra.mxu0 0
        %363 = vmatprep.subr.bf16.mxu0 0
        %364 = vmatpush1.bf16.msra.mxu0 0
        %365 = vmatprep.subr.bf16.mxu0 0
        %366 = vmatpush1.bf16.msra.mxu0 0
        %367 = vmatprep.subr.bf16.mxu0 0
        %368 = vmatpush1.bf16.msra.mxu0 0
        %369 = vmatprep.subr.bf16.mxu0 0
        %370 = vmatpush1.bf16.msra.mxu0 0
        %371 = vmatprep.subr.bf16.mxu0 0
        %372 = vmatpush1.bf16.msra.mxu0 0
        %373 = vmatprep.subr.bf16.mxu0 0
        %374 = vmatpush1.bf16.msra.mxu0 0
        %375 = vmatprep.subr.bf16.mxu0 0
        %376 = vmatpush1.bf16.msra.mxu0 0
        %377 = vmatprep.mubr.bf16.mxu0 0
        %378 = vmatmul.mubr.bf16.gmra.mrb[0].mxu0 %v334
        %v379 = vpop.f32.mrb[0].mxu0
        %v380 = vadd.f32 %v287, %v379
        %v381 = vpop.f32.mrb[0].mxu0
        %v382 = vadd.f32 %v289, %v381
        %v383 = vpop.f32.mrb[0].mxu0
        %v384 = vpop.f32.mrb[0].mxu0
        %385 = vdwg.mxu0
        %386 = vmatprep.subr.bf16.mxu0 0
        %387 = vmatpush1.bf16.msra.mxu0 %v343
        %388 = vmatprep.subr.bf16.mxu0 0
        %389 = vmatpush1.bf16.msra.mxu0 0
        %390 = vmatprep.subr.bf16.mxu0 0
        %391 = vmatpush1.bf16.msra.mxu0 0
        %392 = vmatprep.subr.bf16.mxu0 0
        %393 = vmatpush1.bf16.msra.mxu0 0
        %394 = vmatprep.subr.bf16.mxu0 0
        %395 = vmatpush1.bf16.msra.mxu0 0
        %396 = vmatprep.subr.bf16.mxu0 0
        %397 = vmatpush1.bf16.msra.mxu0 0
        %398 = vmatprep.subr.bf16.mxu0 0
        %399 = vmatpush1.bf16.msra.mxu0 0
        %400 = vmatprep.subr.bf16.mxu0 0
        %401 = vmatpush1.bf16.msra.mxu0 0
        %402 = vmatprep.subr.bf16.mxu0 0
        %403 = vmatpush1.bf16.msra.mxu0 0
        %404 = vmatprep.subr.bf16.mxu0 0
        %405 = vmatpush1.bf16.msra.mxu0 0
        %406 = vmatprep.subr.bf16.mxu0 0
        %407 = vmatpush1.bf16.msra.mxu0 0
        %408 = vmatprep.subr.bf16.mxu0 0
        %409 = vmatpush1.bf16.msra.mxu0 0
        %410 = vmatprep.subr.bf16.mxu0 0
        %411 = vmatpush1.bf16.msra.mxu0 0
        %412 = vmatprep.subr.bf16.mxu0 0
        %413 = vmatpush1.bf16.msra.mxu0 0
        %414 = vmatprep.subr.bf16.mxu0 0
        %415 = vmatpush1.bf16.msra.mxu0 0
        %416 = vmatprep.subr.bf16.mxu0 0
        %417 = vmatpush1.bf16.msra.mxu0 0
        %418 = vmatprep.mubr.bf16.mxu0 0
        %419 = vmatmul.mubr.bf16.gmra.mrb[0].mxu0 %v334
        %v420 = vpop.f32.mrb[0].mxu0
        %v421 = vadd.f32 %v328, %v420
        %v422 = vpop.f32.mrb[0].mxu0
        %v423 = vpop.f32.mrb[0].mxu0
        %v424 = vpop.f32.mrb[0].mxu0
        %425 = vdwg.mxu0
        %s426 = scalar_lea.vmem %s1, 8
        %v427 = vld [vmem:[%s426] sm:$0xf]
        %v428 = vld [vmem:[%s202] sm:$0x3f]
        %v430 = vcombine.high %v428, %v428
        %v432 = vunpack.c.l.s4 1983009808
        %v433 = vunpack.c.0.s8 %v432
        %v434 = vlaneseq
        %v435 = vshrl.u32 %v434, 7
        %v436 = vsub.s32 %v433, %v435
        %v437 = vrot.slane %v428, %v436
        %v439 = vunpack.c.l.s4 1983009808
        %v440 = vunpack.c.0.s8 %v439
        %v441 = vlaneseq
        %v442 = vshrl.u32 %v441, 7
        %v443 = vsub.s32 %v440, %v442
        %v444 = vrot.slane %v430, %v443
        %v445 = vcombine.high %v437, %v437
        %446 = vrot.lane.b32.xlu0 %v437, 126
        %v447 = vpop.permute.xlu0 %446
        %448 = vrot.lane.b32.xlu0 %v445, 126
        %v449 = vpop.permute.xlu0 %448
        %450 = vrot.lane.b32.xlu0 %v444, 126
        %v451 = vpop.permute.xlu0 %450
        %vm452 = vcmask 1031168
        %v453 = vsel %vm452, %v447, %v449
        %v454 = vsel %vm452, %v449, %v451
        %v456 = vsel %vm238, %v427, 0
        %v459 = vsel %vm242, %v453, 0
        %v462 = vsel %vm242, %v454, 0
        %v465 = vsel %vm242, %v451, 0
        %467 = vmatprep.subr.bf16.mxu0 %v462
        %468 = vmatpush1.bf16.msra.mxu0 %v459
        %469 = vmatprep.subr.bf16.mxu0 0
        %470 = vmatpush1.bf16.msra.mxu0 0
        %471 = vmatprep.subr.bf16.mxu0 0
        %472 = vmatpush1.bf16.msra.mxu0 0
        %473 = vmatprep.subr.bf16.mxu0 0
        %474 = vmatpush1.bf16.msra.mxu0 0
        %475 = vmatprep.subr.bf16.mxu0 0
        %476 = vmatpush1.bf16.msra.mxu0 0
        %477 = vmatprep.subr.bf16.mxu0 0
        %478 = vmatpush1.bf16.msra.mxu0 0
        %479 = vmatprep.subr.bf16.mxu0 0
        %480 = vmatpush1.bf16.msra.mxu0 0
        %481 = vmatprep.subr.bf16.mxu0 0
        %482 = vmatpush1.bf16.msra.mxu0 0
        %483 = vmatprep.subr.bf16.mxu0 0
        %484 = vmatpush1.bf16.msra.mxu0 0
        %485 = vmatprep.subr.bf16.mxu0 0
        %486 = vmatpush1.bf16.msra.mxu0 0
        %487 = vmatprep.subr.bf16.mxu0 0
        %488 = vmatpush1.bf16.msra.mxu0 0
        %489 = vmatprep.subr.bf16.mxu0 0
        %490 = vmatpush1.bf16.msra.mxu0 0
        %491 = vmatprep.subr.bf16.mxu0 0
        %492 = vmatpush1.bf16.msra.mxu0 0
        %493 = vmatprep.subr.bf16.mxu0 0
        %494 = vmatpush1.bf16.msra.mxu0 0
        %495 = vmatprep.subr.bf16.mxu0 0
        %496 = vmatpush1.bf16.msra.mxu0 0
        %497 = vmatprep.subr.bf16.mxu0 0
        %498 = vmatpush1.bf16.msra.mxu0 0
        %499 = vmatprep.mubr.bf16.mxu0 0
        %500 = vmatmul.mubr.bf16.gmra.mrb[0].mxu0 %v456
        %v501 = vpop.f32.mrb[0].mxu0
        %v502 = vadd.f32 0.0, %v501
        %v503 = vpop.f32.mrb[0].mxu0
        %v504 = vadd.f32 0.0, %v503
        %v505 = vpop.f32.mrb[0].mxu0
        %v506 = vpop.f32.mrb[0].mxu0
        %507 = vdwg.mxu0
        %508 = vmatprep.subr.bf16.mxu0 0
        %509 = vmatpush1.bf16.msra.mxu0 %v465
        %510 = vmatprep.subr.bf16.mxu0 0
        %511 = vmatpush1.bf16.msra.mxu0 0
        %512 = vmatprep.subr.bf16.mxu0 0
        %513 = vmatpush1.bf16.msra.mxu0 0
        %514 = vmatprep.subr.bf16.mxu0 0
        %515 = vmatpush1.bf16.msra.mxu0 0
        %516 = vmatprep.subr.bf16.mxu0 0
        %517 = vmatpush1.bf16.msra.mxu0 0
        %518 = vmatprep.subr.bf16.mxu0 0
        %519 = vmatpush1.bf16.msra.mxu0 0
        %520 = vmatprep.subr.bf16.mxu0 0
        %521 = vmatpush1.bf16.msra.mxu0 0
        %522 = vmatprep.subr.bf16.mxu0 0
        %523 = vmatpush1.bf16.msra.mxu0 0
        %524 = vmatprep.subr.bf16.mxu0 0
        %525 = vmatpush1.bf16.msra.mxu0 0
        %526 = vmatprep.subr.bf16.mxu0 0
        %527 = vmatpush1.bf16.msra.mxu0 0
        %528 = vmatprep.subr.bf16.mxu0 0
        %529 = vmatpush1.bf16.msra.mxu0 0
        %530 = vmatprep.subr.bf16.mxu0 0
        %531 = vmatpush1.bf16.msra.mxu0 0
        %532 = vmatprep.subr.bf16.mxu0 0
        %533 = vmatpush1.bf16.msra.mxu0 0
        %534 = vmatprep.subr.bf16.mxu0 0
        %535 = vmatpush1.bf16.msra.mxu0 0
        %536 = vmatprep.subr.bf16.mxu0 0
        %537 = vmatpush1.bf16.msra.mxu0 0
        %538 = vmatprep.subr.bf16.mxu0 0
        %539 = vmatpush1.bf16.msra.mxu0 0
        %540 = vmatprep.mubr.bf16.mxu0 0
        %541 = vmatmul.mubr.bf16.gmra.mrb[0].mxu0 %v456
        %v542 = vpop.f32.mrb[0].mxu0
        %v543 = vadd.f32 0.0, %v542
        %v544 = vpop.f32.mrb[0].mxu0
        %v545 = vpop.f32.mrb[0].mxu0
        %v546 = vpop.f32.mrb[0].mxu0
        %547 = vdwg.mxu0
        %v548 = vadd.f32 %v380, %v502
        %v549 = vadd.f32 %v382, %v504
        %v550 = vadd.f32 %v421, %v543
        %s551 = scalar_lea.vmem %s1, 12
        %v552 = vld [vmem:[%s551] sm:$0xf]
        %v553 = vld [vmem:[%s202] sm:$0x3f]
        %v555 = vcombine.high %v553, %v553
        %v557 = vunpack.c.l.s4 1983009808
        %v558 = vunpack.c.0.s8 %v557
        %v559 = vlaneseq
        %v560 = vshrl.u32 %v559, 7
        %v561 = vsub.s32 %v558, %v560
        %v562 = vrot.slane %v553, %v561
        %v564 = vunpack.c.l.s4 1983009808
        %v565 = vunpack.c.0.s8 %v564
        %v566 = vlaneseq
        %v567 = vshrl.u32 %v566, 7
        %v568 = vsub.s32 %v565, %v567
        %v569 = vrot.slane %v555, %v568
        %v570 = vcombine.high %v562, %v562
        %571 = vrot.lane.b32.xlu0 %v562, 110
        %v572 = vpop.permute.xlu0 %571
        %573 = vrot.lane.b32.xlu0 %v570, 110
        %v574 = vpop.permute.xlu0 %573
        %575 = vrot.lane.b32.xlu0 %v569, 110
        %v576 = vpop.permute.xlu0 %575
        %vm577 = vcmask 900096
        %v578 = vsel %vm577, %v572, %v574
        %v579 = vsel %vm577, %v574, %v576
        %v581 = vsel %vm238, %v552, 0
        %v584 = vsel %vm242, %v578, 0
        %v587 = vsel %vm242, %v579, 0
        %v590 = vsel %vm242, %v576, 0
        %592 = vmatprep.subr.bf16.mxu0 %v587
        %593 = vmatpush1.bf16.msra.mxu0 %v584
        %594 = vmatprep.subr.bf16.mxu0 0
        %595 = vmatpush1.bf16.msra.mxu0 0
        %596 = vmatprep.subr.bf16.mxu0 0
        %597 = vmatpush1.bf16.msra.mxu0 0
        %598 = vmatprep.subr.bf16.mxu0 0
        %599 = vmatpush1.bf16.msra.mxu0 0
        %600 = vmatprep.subr.bf16.mxu0 0
        %601 = vmatpush1.bf16.msra.mxu0 0
        %602 = vmatprep.subr.bf16.mxu0 0
        %603 = vmatpush1.bf16.msra.mxu0 0
        %604 = vmatprep.subr.bf16.mxu0 0
        %605 = vmatpush1.bf16.msra.mxu0 0
        %606 = vmatprep.subr.bf16.mxu0 0
        %607 = vmatpush1.bf16.msra.mxu0 0
        %608 = vmatprep.subr.bf16.mxu0 0
        %609 = vmatpush1.bf16.msra.mxu0 0
        %610 = vmatprep.subr.bf16.mxu0 0
        %611 = vmatpush1.bf16.msra.mxu0 0
        %612 = vmatprep.subr.bf16.mxu0 0
        %613 = vmatpush1.bf16.msra.mxu0 0
        %614 = vmatprep.subr.bf16.mxu0 0
        %615 = vmatpush1.bf16.msra.mxu0 0
        %616 = vmatprep.subr.bf16.mxu0 0
        %617 = vmatpush1.bf16.msra.mxu0 0
        %618 = vmatprep.subr.bf16.mxu0 0
        %619 = vmatpush1.bf16.msra.mxu0 0
        %620 = vmatprep.subr.bf16.mxu0 0
        %621 = vmatpush1.bf16.msra.mxu0 0
        %622 = vmatprep.subr.bf16.mxu0 0
        %623 = vmatpush1.bf16.msra.mxu0 0
        %624 = vmatprep.mubr.bf16.mxu0 0
        %625 = vmatmul.mubr.bf16.gmra.mrb[0].mxu0 %v581
        %v626 = vpop.f32.mrb[0].mxu0
        %v627 = vadd.f32 0.0, %v626
        %v628 = vpop.f32.mrb[0].mxu0
        %v629 = vadd.f32 0.0, %v628
        %v630 = vpop.f32.mrb[0].mxu0
        %v631 = vpop.f32.mrb[0].mxu0
        %632 = vdwg.mxu0
        %633 = vmatprep.subr.bf16.mxu0 0
        %634 = vmatpush1.bf16.msra.mxu0 %v590
        %635 = vmatprep.subr.bf16.mxu0 0
        %636 = vmatpush1.bf16.msra.mxu0 0
        %637 = vmatprep.subr.bf16.mxu0 0
        %638 = vmatpush1.bf16.msra.mxu0 0
        %639 = vmatprep.subr.bf16.mxu0 0
        %640 = vmatpush1.bf16.msra.mxu0 0
        %641 = vmatprep.subr.bf16.mxu0 0
        %642 = vmatpush1.bf16.msra.mxu0 0
        %643 = vmatprep.subr.bf16.mxu0 0
        %644 = vmatpush1.bf16.msra.mxu0 0
        %645 = vmatprep.subr.bf16.mxu0 0
        %646 = vmatpush1.bf16.msra.mxu0 0
        %647 = vmatprep.subr.bf16.mxu0 0
        %648 = vmatpush1.bf16.msra.mxu0 0
        %649 = vmatprep.subr.bf16.mxu0 0
        %650 = vmatpush1.bf16.msra.mxu0 0
        %651 = vmatprep.subr.bf16.mxu0 0
        %652 = vmatpush1.bf16.msra.mxu0 0
        %653 = vmatprep.subr.bf16.mxu0 0
        %654 = vmatpush1.bf16.msra.mxu0 0
        %655 = vmatprep.subr.bf16.mxu0 0
        %656 = vmatpush1.bf16.msra.mxu0 0
        %657 = vmatprep.subr.bf16.mxu0 0
        %658 = vmatpush1.bf16.msra.mxu0 0
        %659 = vmatprep.subr.bf16.mxu0 0
        %660 = vmatpush1.bf16.msra.mxu0 0
        %661 = vmatprep.subr.bf16.mxu0 0
        %662 = vmatpush1.bf16.msra.mxu0 0
        %663 = vmatprep.subr.bf16.mxu0 0
        %664 = vmatpush1.bf16.msra.mxu0 0
        %665 = vmatprep.mubr.bf16.mxu0 0
        %666 = vmatmul.mubr.bf16.gmra.mrb[0].mxu0 %v581
        %v667 = vpop.f32.mrb[0].mxu0
        %v668 = vadd.f32 0.0, %v667
        %v669 = vpop.f32.mrb[0].mxu0
        %v670 = vpop.f32.mrb[0].mxu0
        %v671 = vpop.f32.mrb[0].mxu0
        %672 = vdwg.mxu0
        %v673 = vadd.f32 %v548, %v627
        %v674 = vadd.f32 %v549, %v629
        %v675 = vadd.f32 %v550, %v668
        %s676 = scalar_lea.vmem %s1, 16
        %v677 = vld [vmem:[%s676] sm:$0xf]
        %v678 = vld [vmem:[%s202] sm:$0x3f]
        %v680 = vcombine.high %v678, %v678
        %v682 = vunpack.c.l.s4 1983009808
        %v683 = vunpack.c.0.s8 %v682
        %v684 = vlaneseq
        %v685 = vshrl.u32 %v684, 7
        %v686 = vsub.s32 %v683, %v685
        %v687 = vrot.slane %v678, %v686
        %v689 = vunpack.c.l.s4 1983009808
        %v690 = vunpack.c.0.s8 %v689
        %v691 = vlaneseq
        %v692 = vshrl.u32 %v691, 7
        %v693 = vsub.s32 %v690, %v692
        %v694 = vrot.slane %v680, %v693
        %v695 = vcombine.high %v687, %v687
        %696 = vrot.lane.b32.xlu0 %v687, 109
        %v697 = vpop.permute.xlu0 %696
        %698 = vrot.lane.b32.xlu0 %v695, 109
        %v699 = vpop.permute.xlu0 %698
        %700 = vrot.lane.b32.xlu0 %v694, 109
        %v701 = vpop.permute.xlu0 %700
        %vm702 = vcmask 891904
        %v703 = vsel %vm702, %v697, %v699
        %v704 = vsel %vm702, %v699, %v701
        %v706 = vsel %vm238, %v677, 0
        %v709 = vsel %vm242, %v703, 0
        %v712 = vsel %vm242, %v704, 0
        %v715 = vsel %vm242, %v701, 0
        %717 = vmatprep.subr.bf16.mxu0 %v712
        %718 = vmatpush1.bf16.msra.mxu0 %v709
        %719 = vmatprep.subr.bf16.mxu0 0
        %720 = vmatpush1.bf16.msra.mxu0 0
        %721 = vmatprep.subr.bf16.mxu0 0
        %722 = vmatpush1.bf16.msra.mxu0 0
        %723 = vmatprep.subr.bf16.mxu0 0
        %724 = vmatpush1.bf16.msra.mxu0 0
        %725 = vmatprep.subr.bf16.mxu0 0
        %726 = vmatpush1.bf16.msra.mxu0 0
        %727 = vmatprep.subr.bf16.mxu0 0
        %728 = vmatpush1.bf16.msra.mxu0 0
        %729 = vmatprep.subr.bf16.mxu0 0
        %730 = vmatpush1.bf16.msra.mxu0 0
        %731 = vmatprep.subr.bf16.mxu0 0
        %732 = vmatpush1.bf16.msra.mxu0 0
        %733 = vmatprep.subr.bf16.mxu0 0
        %734 = vmatpush1.bf16.msra.mxu0 0
        %735 = vmatprep.subr.bf16.mxu0 0
        %736 = vmatpush1.bf16.msra.mxu0 0
        %737 = vmatprep.subr.bf16.mxu0 0
        %738 = vmatpush1.bf16.msra.mxu0 0
        %739 = vmatprep.subr.bf16.mxu0 0
        %740 = vmatpush1.bf16.msra.mxu0 0
        %741 = vmatprep.subr.bf16.mxu0 0
        %742 = vmatpush1.bf16.msra.mxu0 0
        %743 = vmatprep.subr.bf16.mxu0 0
        %744 = vmatpush1.bf16.msra.mxu0 0
        %745 = vmatprep.subr.bf16.mxu0 0
        %746 = vmatpush1.bf16.msra.mxu0 0
        %747 = vmatprep.subr.bf16.mxu0 0
        %748 = vmatpush1.bf16.msra.mxu0 0
        %749 = vmatprep.mubr.bf16.mxu0 0
        %750 = vmatmul.mubr.bf16.gmra.mrb[0].mxu0 %v706
        %v751 = vpop.f32.mrb[0].mxu0
        %v752 = vadd.f32 0.0, %v751
        %v753 = vpop.f32.mrb[0].mxu0
        %v754 = vadd.f32 0.0, %v753
        %v755 = vpop.f32.mrb[0].mxu0
        %v756 = vpop.f32.mrb[0].mxu0
        %757 = vdwg.mxu0
        %758 = vmatprep.subr.bf16.mxu0 0
        %759 = vmatpush1.bf16.msra.mxu0 %v715
        %760 = vmatprep.subr.bf16.mxu0 0
        %761 = vmatpush1.bf16.msra.mxu0 0
        %762 = vmatprep.subr.bf16.mxu0 0
        %763 = vmatpush1.bf16.msra.mxu0 0
        %764 = vmatprep.subr.bf16.mxu0 0
        %765 = vmatpush1.bf16.msra.mxu0 0
        %766 = vmatprep.subr.bf16.mxu0 0
        %767 = vmatpush1.bf16.msra.mxu0 0
        %768 = vmatprep.subr.bf16.mxu0 0
        %769 = vmatpush1.bf16.msra.mxu0 0
        %770 = vmatprep.subr.bf16.mxu0 0
        %771 = vmatpush1.bf16.msra.mxu0 0
        %772 = vmatprep.subr.bf16.mxu0 0
        %773 = vmatpush1.bf16.msra.mxu0 0
        %774 = vmatprep.subr.bf16.mxu0 0
        %775 = vmatpush1.bf16.msra.mxu0 0
        %776 = vmatprep.subr.bf16.mxu0 0
        %777 = vmatpush1.bf16.msra.mxu0 0
        %778 = vmatprep.subr.bf16.mxu0 0
        %779 = vmatpush1.bf16.msra.mxu0 0
        %780 = vmatprep.subr.bf16.mxu0 0
        %781 = vmatpush1.bf16.msra.mxu0 0
        %782 = vmatprep.subr.bf16.mxu0 0
        %783 = vmatpush1.bf16.msra.mxu0 0
        %784 = vmatprep.subr.bf16.mxu0 0
        %785 = vmatpush1.bf16.msra.mxu0 0
        %786 = vmatprep.subr.bf16.mxu0 0
        %787 = vmatpush1.bf16.msra.mxu0 0
        %788 = vmatprep.subr.bf16.mxu0 0
        %789 = vmatpush1.bf16.msra.mxu0 0
        %790 = vmatprep.mubr.bf16.mxu0 0
        %791 = vmatmul.mubr.bf16.gmra.mrb[0].mxu0 %v706
        %v792 = vpop.f32.mrb[0].mxu0
        %v793 = vadd.f32 0.0, %v792
        %v794 = vpop.f32.mrb[0].mxu0
        %v795 = vpop.f32.mrb[0].mxu0
        %v796 = vpop.f32.mrb[0].mxu0
        %797 = vdwg.mxu0
        %v798 = vadd.f32 %v673, %v752
        %v799 = vadd.f32 %v674, %v754
        %v800 = vadd.f32 %v675, %v793
        %s801 = scalar_lea.vmem %s1, 20
        %v802 = vld [vmem:[%s801] sm:$0xf]
        %v803 = vld [vmem:[%s202] sm:$0x3f]
        %v805 = vcombine.high %v803, %v803
        %v807 = vunpack.c.l.s4 1983009808
        %v808 = vunpack.c.0.s8 %v807
        %v809 = vlaneseq
        %v810 = vshrl.u32 %v809, 7
        %v811 = vsub.s32 %v808, %v810
        %v812 = vrot.slane %v803, %v811
        %v814 = vunpack.c.l.s4 1983009808
        %v815 = vunpack.c.0.s8 %v814
        %v816 = vlaneseq
        %v817 = vshrl.u32 %v816, 7
        %v818 = vsub.s32 %v815, %v817
        %v819 = vrot.slane %v805, %v818
        %v820 = vcombine.high %v812, %v812
        %821 = vrot.lane.b32.xlu0 %v812, 108
        %v822 = vpop.permute.xlu0 %821
        %823 = vrot.lane.b32.xlu0 %v820, 108
        %v824 = vpop.permute.xlu0 %823
        %825 = vrot.lane.b32.xlu0 %v819, 108
        %v826 = vpop.permute.xlu0 %825
        %vm827 = vcmask 883712
        %v828 = vsel %vm827, %v822, %v824
        %v829 = vsel %vm827, %v824, %v826
        %v831 = vsel %vm238, %v802, 0
        %v834 = vsel %vm242, %v828, 0
        %v837 = vsel %vm242, %v829, 0
        %v840 = vsel %vm242, %v826, 0
        %842 = vmatprep.subr.bf16.mxu0 %v837
        %843 = vmatpush1.bf16.msra.mxu0 %v834
        %844 = vmatprep.subr.bf16.mxu0 0
        %845 = vmatpush1.bf16.msra.mxu0 0
        %846 = vmatprep.subr.bf16.mxu0 0
        %847 = vmatpush1.bf16.msra.mxu0 0
        %848 = vmatprep.subr.bf16.mxu0 0
        %849 = vmatpush1.bf16.msra.mxu0 0
        %850 = vmatprep.subr.bf16.mxu0 0
        %851 = vmatpush1.bf16.msra.mxu0 0
        %852 = vmatprep.subr.bf16.mxu0 0
        %853 = vmatpush1.bf16.msra.mxu0 0
        %854 = vmatprep.subr.bf16.mxu0 0
        %855 = vmatpush1.bf16.msra.mxu0 0
        %856 = vmatprep.subr.bf16.mxu0 0
        %857 = vmatpush1.bf16.msra.mxu0 0
        %858 = vmatprep.subr.bf16.mxu0 0
        %859 = vmatpush1.bf16.msra.mxu0 0
        %860 = vmatprep.subr.bf16.mxu0 0
        %861 = vmatpush1.bf16.msra.mxu0 0
        %862 = vmatprep.subr.bf16.mxu0 0
        %863 = vmatpush1.bf16.msra.mxu0 0
        %864 = vmatprep.subr.bf16.mxu0 0
        %865 = vmatpush1.bf16.msra.mxu0 0
        %866 = vmatprep.subr.bf16.mxu0 0
        %867 = vmatpush1.bf16.msra.mxu0 0
        %868 = vmatprep.subr.bf16.mxu0 0
        %869 = vmatpush1.bf16.msra.mxu0 0
        %870 = vmatprep.subr.bf16.mxu0 0
        %871 = vmatpush1.bf16.msra.mxu0 0
        %872 = vmatprep.subr.bf16.mxu0 0
        %873 = vmatpush1.bf16.msra.mxu0 0
        %874 = vmatprep.mubr.bf16.mxu0 0
        %875 = vmatmul.mubr.bf16.gmra.mrb[0].mxu0 %v831
        %v876 = vpop.f32.mrb[0].mxu0
        %v877 = vadd.f32 0.0, %v876
        %v878 = vpop.f32.mrb[0].mxu0
        %v879 = vadd.f32 0.0, %v878
        %v880 = vpop.f32.mrb[0].mxu0
        %v881 = vpop.f32.mrb[0].mxu0
        %882 = vdwg.mxu0
        %883 = vmatprep.subr.bf16.mxu0 0
        %884 = vmatpush1.bf16.msra.mxu0 %v840
        %885 = vmatprep.subr.bf16.mxu0 0
        %886 = vmatpush1.bf16.msra.mxu0 0
        %887 = vmatprep.subr.bf16.mxu0 0
        %888 = vmatpush1.bf16.msra.mxu0 0
        %889 = vmatprep.subr.bf16.mxu0 0
        %890 = vmatpush1.bf16.msra.mxu0 0
        %891 = vmatprep.subr.bf16.mxu0 0
        %892 = vmatpush1.bf16.msra.mxu0 0
        %893 = vmatprep.subr.bf16.mxu0 0
        %894 = vmatpush1.bf16.msra.mxu0 0
        %895 = vmatprep.subr.bf16.mxu0 0
        %896 = vmatpush1.bf16.msra.mxu0 0
        %897 = vmatprep.subr.bf16.mxu0 0
        %898 = vmatpush1.bf16.msra.mxu0 0
        %899 = vmatprep.subr.bf16.mxu0 0
        %900 = vmatpush1.bf16.msra.mxu0 0
        %901 = vmatprep.subr.bf16.mxu0 0
        %902 = vmatpush1.bf16.msra.mxu0 0
        %903 = vmatprep.subr.bf16.mxu0 0
        %904 = vmatpush1.bf16.msra.mxu0 0
        %905 = vmatprep.subr.bf16.mxu0 0
        %906 = vmatpush1.bf16.msra.mxu0 0
        %907 = vmatprep.subr.bf16.mxu0 0
        %908 = vmatpush1.bf16.msra.mxu0 0
        %909 = vmatprep.subr.bf16.mxu0 0
        %910 = vmatpush1.bf16.msra.mxu0 0
        %911 = vmatprep.subr.bf16.mxu0 0
        %912 = vmatpush1.bf16.msra.mxu0 0
        %913 = vmatprep.subr.bf16.mxu0 0
        %914 = vmatpush1.bf16.msra.mxu0 0
        %915 = vmatprep.mubr.bf16.mxu0 0
        %916 = vmatmul.mubr.bf16.gmra.mrb[0].mxu0 %v831
        %v917 = vpop.f32.mrb[0].mxu0
        %v918 = vadd.f32 0.0, %v917
        %v919 = vpop.f32.mrb[0].mxu0
        %v920 = vpop.f32.mrb[0].mxu0
        %v921 = vpop.f32.mrb[0].mxu0
        %922 = vdwg.mxu0
        %v923 = vadd.f32 %v798, %v877
        %v924 = vadd.f32 %v799, %v879
        %v925 = vadd.f32 %v800, %v918
        %s926 = scalar_lea.vmem %s1, 24
        %v927 = vld [vmem:[%s926] sm:$0xf]
        %v928 = vld [vmem:[%s202] sm:$0x3f]
        %v930 = vcombine.high %v928, %v928
        %v932 = vunpack.c.l.s4 1983009808
        %v933 = vunpack.c.0.s8 %v932
        %v934 = vlaneseq
        %v935 = vshrl.u32 %v934, 7
        %v936 = vsub.s32 %v933, %v935
        %v937 = vrot.slane %v928, %v936
        %v939 = vunpack.c.l.s4 1983009808
        %v940 = vunpack.c.0.s8 %v939
        %v941 = vlaneseq
        %v942 = vshrl.u32 %v941, 7
        %v943 = vsub.s32 %v940, %v942
        %v944 = vrot.slane %v930, %v943
        %v945 = vcombine.high %v937, %v937
        %946 = vrot.lane.b32.xlu0 %v937, 92
        %v947 = vpop.permute.xlu0 %946
        %948 = vrot.lane.b32.xlu0 %v945, 92
        %v949 = vpop.permute.xlu0 %948
        %950 = vrot.lane.b32.xlu0 %v944, 92
        %v951 = vpop.permute.xlu0 %950
        %vm952 = vcmask 752640
        %v953 = vsel %vm952, %v947, %v949
        %v954 = vsel %vm952, %v949, %v951
        %v956 = vsel %vm238, %v927, 0
        %v959 = vsel %vm242, %v953, 0
        %v962 = vsel %vm242, %v954, 0
        %v965 = vsel %vm242, %v951, 0
        %967 = vmatprep.subr.bf16.mxu0 %v962
        %968 = vmatpush1.bf16.msra.mxu0 %v959
        %969 = vmatprep.subr.bf16.mxu0 0
        %970 = vmatpush1.bf16.msra.mxu0 0
        %971 = vmatprep.subr.bf16.mxu0 0
        %972 = vmatpush1.bf16.msra.mxu0 0
        %973 = vmatprep.subr.bf16.mxu0 0
        %974 = vmatpush1.bf16.msra.mxu0 0
        %975 = vmatprep.subr.bf16.mxu0 0
        %976 = vmatpush1.bf16.msra.mxu0 0
        %977 = vmatprep.subr.bf16.mxu0 0
        %978 = vmatpush1.bf16.msra.mxu0 0
        %979 = vmatprep.subr.bf16.mxu0 0
        %980 = vmatpush1.bf16.msra.mxu0 0
        %981 = vmatprep.subr.bf16.mxu0 0
        %982 = vmatpush1.bf16.msra.mxu0 0
        %983 = vmatprep.subr.bf16.mxu0 0
        %984 = vmatpush1.bf16.msra.mxu0 0
        %985 = vmatprep.subr.bf16.mxu0 0
        %986 = vmatpush1.bf16.msra.mxu0 0
        %987 = vmatprep.subr.bf16.mxu0 0
        %988 = vmatpush1.bf16.msra.mxu0 0
        %989 = vmatprep.subr.bf16.mxu0 0
        %990 = vmatpush1.bf16.msra.mxu0 0
        %991 = vmatprep.subr.bf16.mxu0 0
        %992 = vmatpush1.bf16.msra.mxu0 0
        %993 = vmatprep.subr.bf16.mxu0 0
        %994 = vmatpush1.bf16.msra.mxu0 0
        %995 = vmatprep.subr.bf16.mxu0 0
        %996 = vmatpush1.bf16.msra.mxu0 0
        %997 = vmatprep.subr.bf16.mxu0 0
        %998 = vmatpush1.bf16.msra.mxu0 0
        %999 = vmatprep.mubr.bf16.mxu0 0
        %1000 = vmatmul.mubr.bf16.gmra.mrb[0].mxu0 %v956
        %v1001 = vpop.f32.mrb[0].mxu0
        %v1002 = vadd.f32 0.0, %v1001
        %v1003 = vpop.f32.mrb[0].mxu0
        %v1004 = vadd.f32 0.0, %v1003
        %v1005 = vpop.f32.mrb[0].mxu0
        %v1006 = vpop.f32.mrb[0].mxu0
        %1007 = vdwg.mxu0
        %1008 = vmatprep.subr.bf16.mxu0 0
        %1009 = vmatpush1.bf16.msra.mxu0 %v965
        %1010 = vmatprep.subr.bf16.mxu0 0
        %1011 = vmatpush1.bf16.msra.mxu0 0
        %1012 = vmatprep.subr.bf16.mxu0 0
        %1013 = vmatpush1.bf16.msra.mxu0 0
        %1014 = vmatprep.subr.bf16.mxu0 0
        %1015 = vmatpush1.bf16.msra.mxu0 0
        %1016 = vmatprep.subr.bf16.mxu0 0
        %1017 = vmatpush1.bf16.msra.mxu0 0
        %1018 = vmatprep.subr.bf16.mxu0 0
        %1019 = vmatpush1.bf16.msra.mxu0 0
        %1020 = vmatprep.subr.bf16.mxu0 0
        %1021 = vmatpush1.bf16.msra.mxu0 0
        %1022 = vmatprep.subr.bf16.mxu0 0
        %1023 = vmatpush1.bf16.msra.mxu0 0
        %1024 = vmatprep.subr.bf16.mxu0 0
        %1025 = vmatpush1.bf16.msra.mxu0 0
        %1026 = vmatprep.subr.bf16.mxu0 0
        %1027 = vmatpush1.bf16.msra.mxu0 0
        %1028 = vmatprep.subr.bf16.mxu0 0
        %1029 = vmatpush1.bf16.msra.mxu0 0
        %1030 = vmatprep.subr.bf16.mxu0 0
        %1031 = vmatpush1.bf16.msra.mxu0 0
        %1032 = vmatprep.subr.bf16.mxu0 0
        %1033 = vmatpush1.bf16.msra.mxu0 0
        %1034 = vmatprep.subr.bf16.mxu0 0
        %1035 = vmatpush1.bf16.msra.mxu0 0
        %1036 = vmatprep.subr.bf16.mxu0 0
        %1037 = vmatpush1.bf16.msra.mxu0 0
        %1038 = vmatprep.subr.bf16.mxu0 0
        %1039 = vmatpush1.bf16.msra.mxu0 0
        %1040 = vmatprep.mubr.bf16.mxu0 0
        %1041 = vmatmul.mubr.bf16.gmra.mrb[0].mxu0 %v956
        %v1042 = vpop.f32.mrb[0].mxu0
        %v1043 = vadd.f32 0.0, %v1042
        %v1044 = vpop.f32.mrb[0].mxu0
        %v1045 = vpop.f32.mrb[0].mxu0
        %v1046 = vpop.f32.mrb[0].mxu0
        %1047 = vdwg.mxu0
        %v1048 = vadd.f32 %v923, %v1002
        %v1049 = vadd.f32 %v924, %v1004
        %v1050 = vadd.f32 %v925, %v1043
        %s1051 = scalar_lea.vmem %s1, 28
        %v1052 = vld [vmem:[%s1051] sm:$0xf]
        %v1053 = vld [vmem:[%s202] sm:$0x3f]
        %v1055 = vcombine.high %v1053, %v1053
        %v1057 = vunpack.c.l.s4 1983009808
        %v1058 = vunpack.c.0.s8 %v1057
        %v1059 = vlaneseq
        %v1060 = vshrl.u32 %v1059, 7
        %v1061 = vsub.s32 %v1058, %v1060
        %v1062 = vrot.slane %v1053, %v1061
        %v1064 = vunpack.c.l.s4 1983009808
        %v1065 = vunpack.c.0.s8 %v1064
        %v1066 = vlaneseq
        %v1067 = vshrl.u32 %v1066, 7
        %v1068 = vsub.s32 %v1065, %v1067
        %v1069 = vrot.slane %v1055, %v1068
        %v1070 = vcombine.high %v1062, %v1062
        %1071 = vrot.lane.b32.xlu0 %v1062, 91
        %v1072 = vpop.permute.xlu0 %1071
        %1073 = vrot.lane.b32.xlu0 %v1070, 91
        %v1074 = vpop.permute.xlu0 %1073
        %1075 = vrot.lane.b32.xlu0 %v1069, 91
        %v1076 = vpop.permute.xlu0 %1075
        %vm1077 = vcmask 744448
        %v1078 = vsel %vm1077, %v1072, %v1074
        %v1079 = vsel %vm1077, %v1074, %v1076
        %v1081 = vsel %vm238, %v1052, 0
        %v1084 = vsel %vm242, %v1078, 0
        %v1087 = vsel %vm242, %v1079, 0
        %v1090 = vsel %vm242, %v1076, 0
        %1092 = vmatprep.subr.bf16.mxu0 %v1087
        %1093 = vmatpush1.bf16.msra.mxu0 %v1084
        %1094 = vmatprep.subr.bf16.mxu0 0
        %1095 = vmatpush1.bf16.msra.mxu0 0
        %1096 = vmatprep.subr.bf16.mxu0 0
        %1097 = vmatpush1.bf16.msra.mxu0 0
        %1098 = vmatprep.subr.bf16.mxu0 0
        %1099 = vmatpush1.bf16.msra.mxu0 0
        %1100 = vmatprep.subr.bf16.mxu0 0
        %1101 = vmatpush1.bf16.msra.mxu0 0
        %1102 = vmatprep.subr.bf16.mxu0 0
        %1103 = vmatpush1.bf16.msra.mxu0 0
        %1104 = vmatprep.subr.bf16.mxu0 0
        %1105 = vmatpush1.bf16.msra.mxu0 0
        %1106 = vmatprep.subr.bf16.mxu0 0
        %1107 = vmatpush1.bf16.msra.mxu0 0
        %1108 = vmatprep.subr.bf16.mxu0 0
        %1109 = vmatpush1.bf16.msra.mxu0 0
        %1110 = vmatprep.subr.bf16.mxu0 0
        %1111 = vmatpush1.bf16.msra.mxu0 0
        %1112 = vmatprep.subr.bf16.mxu0 0
        %1113 = vmatpush1.bf16.msra.mxu0 0
        %1114 = vmatprep.subr.bf16.mxu0 0
        %1115 = vmatpush1.bf16.msra.mxu0 0
        %1116 = vmatprep.subr.bf16.mxu0 0
        %1117 = vmatpush1.bf16.msra.mxu0 0
        %1118 = vmatprep.subr.bf16.mxu0 0
        %1119 = vmatpush1.bf16.msra.mxu0 0
        %1120 = vmatprep.subr.bf16.mxu0 0
        %1121 = vmatpush1.bf16.msra.mxu0 0
        %1122 = vmatprep.subr.bf16.mxu0 0
        %1123 = vmatpush1.bf16.msra.mxu0 0
        %1124 = vmatprep.mubr.bf16.mxu0 0
        %1125 = vmatmul.mubr.bf16.gmra.mrb[0].mxu0 %v1081
        %v1126 = vpop.f32.mrb[0].mxu0
        %v1127 = vadd.f32 0.0, %v1126
        %v1128 = vpop.f32.mrb[0].mxu0
        %v1129 = vadd.f32 0.0, %v1128
        %v1130 = vpop.f32.mrb[0].mxu0
        %v1131 = vpop.f32.mrb[0].mxu0
        %1132 = vdwg.mxu0
        %1133 = vmatprep.subr.bf16.mxu0 0
        %1134 = vmatpush1.bf16.msra.mxu0 %v1090
        %1135 = vmatprep.subr.bf16.mxu0 0
        %1136 = vmatpush1.bf16.msra.mxu0 0
        %1137 = vmatprep.subr.bf16.mxu0 0
        %1138 = vmatpush1.bf16.msra.mxu0 0
        %1139 = vmatprep.subr.bf16.mxu0 0
        %1140 = vmatpush1.bf16.msra.mxu0 0
        %1141 = vmatprep.subr.bf16.mxu0 0
        %1142 = vmatpush1.bf16.msra.mxu0 0
        %1143 = vmatprep.subr.bf16.mxu0 0
        %1144 = vmatpush1.bf16.msra.mxu0 0
        %1145 = vmatprep.subr.bf16.mxu0 0
        %1146 = vmatpush1.bf16.msra.mxu0 0
        %1147 = vmatprep.subr.bf16.mxu0 0
        %1148 = vmatpush1.bf16.msra.mxu0 0
        %1149 = vmatprep.subr.bf16.mxu0 0
        %1150 = vmatpush1.bf16.msra.mxu0 0
        %1151 = vmatprep.subr.bf16.mxu0 0
        %1152 = vmatpush1.bf16.msra.mxu0 0
        %1153 = vmatprep.subr.bf16.mxu0 0
        %1154 = vmatpush1.bf16.msra.mxu0 0
        %1155 = vmatprep.subr.bf16.mxu0 0
        %1156 = vmatpush1.bf16.msra.mxu0 0
        %1157 = vmatprep.subr.bf16.mxu0 0
        %1158 = vmatpush1.bf16.msra.mxu0 0
        %1159 = vmatprep.subr.bf16.mxu0 0
        %1160 = vmatpush1.bf16.msra.mxu0 0
        %1161 = vmatprep.subr.bf16.mxu0 0
        %1162 = vmatpush1.bf16.msra.mxu0 0
        %1163 = vmatprep.subr.bf16.mxu0 0
        %1164 = vmatpush1.bf16.msra.mxu0 0
        %1165 = vmatprep.mubr.bf16.mxu0 0
        %1166 = vmatmul.mubr.bf16.gmra.mrb[0].mxu0 %v1081
        %v1167 = vpop.f32.mrb[0].mxu0
        %v1168 = vadd.f32 0.0, %v1167
        %v1169 = vpop.f32.mrb[0].mxu0
        %v1170 = vpop.f32.mrb[0].mxu0
        %v1171 = vpop.f32.mrb[0].mxu0
        %1172 = vdwg.mxu0
        %v1173 = vadd.f32 %v1048, %v1127
        %v1174 = vadd.f32 %v1049, %v1129
        %v1175 = vadd.f32 %v1050, %v1168
        %s1176 = scalar_lea.vmem %s1, 32
        %v1177 = vld [vmem:[%s1176] sm:$0xf]
        %v1178 = vld [vmem:[%s202] sm:$0x3f]
        %v1180 = vcombine.high %v1178, %v1178
        %v1182 = vunpack.c.l.s4 1983009808
        %v1183 = vunpack.c.0.s8 %v1182
        %v1184 = vlaneseq
        %v1185 = vshrl.u32 %v1184, 7
        %v1186 = vsub.s32 %v1183, %v1185
        %v1187 = vrot.slane %v1178, %v1186
        %v1189 = vunpack.c.l.s4 1983009808
        %v1190 = vunpack.c.0.s8 %v1189
        %v1191 = vlaneseq
        %v1192 = vshrl.u32 %v1191, 7
        %v1193 = vsub.s32 %v1190, %v1192
        %v1194 = vrot.slane %v1180, %v1193
        %v1195 = vcombine.high %v1187, %v1187
        %1196 = vrot.lane.b32.xlu0 %v1187, 90
        %v1197 = vpop.permute.xlu0 %1196
        %1198 = vrot.lane.b32.xlu0 %v1195, 90
        %v1199 = vpop.permute.xlu0 %1198
        %1200 = vrot.lane.b32.xlu0 %v1194, 90
        %v1201 = vpop.permute.xlu0 %1200
        %vm1202 = vcmask 736256
        %v1203 = vsel %vm1202, %v1197, %v1199
        %v1204 = vsel %vm1202, %v1199, %v1201
        %v1206 = vsel %vm238, %v1177, 0
        %v1209 = vsel %vm242, %v1203, 0
        %v1212 = vsel %vm242, %v1204, 0
        %v1215 = vsel %vm242, %v1201, 0
        %1217 = vmatprep.subr.bf16.mxu0 %v1212
        %1218 = vmatpush1.bf16.msra.mxu0 %v1209
        %1219 = vmatprep.subr.bf16.mxu0 0
        %1220 = vmatpush1.bf16.msra.mxu0 0
        %1221 = vmatprep.subr.bf16.mxu0 0
        %1222 = vmatpush1.bf16.msra.mxu0 0
        %1223 = vmatprep.subr.bf16.mxu0 0
        %1224 = vmatpush1.bf16.msra.mxu0 0
        %1225 = vmatprep.subr.bf16.mxu0 0
        %1226 = vmatpush1.bf16.msra.mxu0 0
        %1227 = vmatprep.subr.bf16.mxu0 0
        %1228 = vmatpush1.bf16.msra.mxu0 0
        %1229 = vmatprep.subr.bf16.mxu0 0
        %1230 = vmatpush1.bf16.msra.mxu0 0
        %1231 = vmatprep.subr.bf16.mxu0 0
        %1232 = vmatpush1.bf16.msra.mxu0 0
        %1233 = vmatprep.subr.bf16.mxu0 0
        %1234 = vmatpush1.bf16.msra.mxu0 0
        %1235 = vmatprep.subr.bf16.mxu0 0
        %1236 = vmatpush1.bf16.msra.mxu0 0
        %1237 = vmatprep.subr.bf16.mxu0 0
        %1238 = vmatpush1.bf16.msra.mxu0 0
        %1239 = vmatprep.subr.bf16.mxu0 0
        %1240 = vmatpush1.bf16.msra.mxu0 0
        %1241 = vmatprep.subr.bf16.mxu0 0
        %1242 = vmatpush1.bf16.msra.mxu0 0
        %1243 = vmatprep.subr.bf16.mxu0 0
        %1244 = vmatpush1.bf16.msra.mxu0 0
        %1245 = vmatprep.subr.bf16.mxu0 0
        %1246 = vmatpush1.bf16.msra.mxu0 0
        %1247 = vmatprep.subr.bf16.mxu0 0
        %1248 = vmatpush1.bf16.msra.mxu0 0
        %1249 = vmatprep.mubr.bf16.mxu0 0
        %1250 = vmatmul.mubr.bf16.gmra.mrb[0].mxu0 %v1206
        %v1251 = vpop.f32.mrb[0].mxu0
        %v1252 = vadd.f32 0.0, %v1251
        %v1253 = vpop.f32.mrb[0].mxu0
        %v1254 = vadd.f32 0.0, %v1253
        %v1255 = vpop.f32.mrb[0].mxu0
        %v1256 = vpop.f32.mrb[0].mxu0
        %1257 = vdwg.mxu0
        %1258 = vmatprep.subr.bf16.mxu0 0
        %1259 = vmatpush1.bf16.msra.mxu0 %v1215
        %1260 = vmatprep.subr.bf16.mxu0 0
        %1261 = vmatpush1.bf16.msra.mxu0 0
        %1262 = vmatprep.subr.bf16.mxu0 0
        %1263 = vmatpush1.bf16.msra.mxu0 0
        %1264 = vmatprep.subr.bf16.mxu0 0
        %1265 = vmatpush1.bf16.msra.mxu0 0
        %1266 = vmatprep.subr.bf16.mxu0 0
        %1267 = vmatpush1.bf16.msra.mxu0 0
        %1268 = vmatprep.subr.bf16.mxu0 0
        %1269 = vmatpush1.bf16.msra.mxu0 0
        %1270 = vmatprep.subr.bf16.mxu0 0
        %1271 = vmatpush1.bf16.msra.mxu0 0
        %1272 = vmatprep.subr.bf16.mxu0 0
        %1273 = vmatpush1.bf16.msra.mxu0 0
        %1274 = vmatprep.subr.bf16.mxu0 0
        %1275 = vmatpush1.bf16.msra.mxu0 0
        %1276 = vmatprep.subr.bf16.mxu0 0
        %1277 = vmatpush1.bf16.msra.mxu0 0
        %1278 = vmatprep.subr.bf16.mxu0 0
        %1279 = vmatpush1.bf16.msra.mxu0 0
        %1280 = vmatprep.subr.bf16.mxu0 0
        %1281 = vmatpush1.bf16.msra.mxu0 0
        %1282 = vmatprep.subr.bf16.mxu0 0
        %1283 = vmatpush1.bf16.msra.mxu0 0
        %1284 = vmatprep.subr.bf16.mxu0 0
        %1285 = vmatpush1.bf16.msra.mxu0 0
        %1286 = vmatprep.subr.bf16.mxu0 0
        %1287 = vmatpush1.bf16.msra.mxu0 0
        %1288 = vmatprep.subr.bf16.mxu0 0
        %1289 = vmatpush1.bf16.msra.mxu0 0
        %1290 = vmatprep.mubr.bf16.mxu0 0
        %1291 = vmatmul.mubr.bf16.gmra.mrb[0].mxu0 %v1206
        %v1292 = vpop.f32.mrb[0].mxu0
        %v1293 = vadd.f32 0.0, %v1292
        %v1294 = vpop.f32.mrb[0].mxu0
        %v1295 = vpop.f32.mrb[0].mxu0
        %v1296 = vpop.f32.mrb[0].mxu0
        %1297 = vdwg.mxu0
        %v1298 = vadd.f32 %v1173, %v1252
        %v1299 = vadd.f32 %v1174, %v1254
        %v1300 = vadd.f32 %v1175, %v1293
        %v1301 = vld [vmem:[%s2] sm:$0xff]
        %1303 = vset.pattern.permute.xlu0 0
        %1304 = vperm.xlu0 %1303, %v1301
        %v1305 = vpop.permute.xlu0 %1304
        %v1307 = vadd.f32 %v1298, %v1305
        %v1308 = vadd.f32 %v1299, %v1305
        %v1309 = vadd.f32 %v1300, %v1305
        %1310 = vst [vmem:[%s191] sm:$0xff] %v1307
        %1311 = vst [vmem:[%s191 + $0x8] sm:$0xff] %v1308
        %vm1312 = vcmask 261120
        %1313 = vst.msk [vmem:[%s191 + $0x10] sm:$0xff] %vm1312, %v1309
        %v1314 = vlaneseq
        %v1315 = vand.u32 %v1314, 127
        %v1316 = vadd.s32 %v1315, 128
        %v1317 = vadd.s32 %v1315, 256
        %vm1318 = vcmp.lt.s32.totalorder %v1315, 0
        %v1319 = vsub.s32 0, %v1315
        %v1320 = vsel %vm1318, %v1319, %v1315
        %v1321 = vmul.u32.u64.compose %v1320, 3817748708
        %v1322 = vextract.low.u32 %v1321
        %v1323 = vextract.high.u32 %v1321
        %v1324 = vshrl.u32 %v1323, 4
        %v1325 = vmul.u32 %v1324, 18
        %v1326 = vsub.s32 %v1320, %v1325
        %v1327 = vsub.s32 0, %v1326
        %v1328 = vsel %vm1318, %v1327, %v1326
        %vm1329 = vcmp.lt.s32.totalorder %v1316, 0
        %v1330 = vsub.s32 0, %v1316
        %v1331 = vsel %vm1329, %v1330, %v1316
        %v1332 = vmul.u32.u64.compose %v1331, 3817748708
        %v1333 = vextract.low.u32 %v1332
        %v1334 = vextract.high.u32 %v1332
        %v1335 = vshrl.u32 %v1334, 4
        %v1336 = vmul.u32 %v1335, 18
        %v1337 = vsub.s32 %v1331, %v1336
        %v1338 = vsub.s32 0, %v1337
        %v1339 = vsel %vm1329, %v1338, %v1337
        %vm1340 = vcmp.lt.s32.totalorder %v1317, 0
        %v1341 = vsub.s32 0, %v1317
        %v1342 = vsel %vm1340, %v1341, %v1317
        %v1343 = vmul.u32.u64.compose %v1342, 3817748708
        %v1344 = vextract.low.u32 %v1343
        %v1345 = vextract.high.u32 %v1343
        %v1346 = vshrl.u32 %v1345, 4
        %v1347 = vmul.u32 %v1346, 18
        %v1348 = vsub.s32 %v1342, %v1347
        %v1349 = vsub.s32 0, %v1348
        %v1350 = vsel %vm1340, %v1349, %v1348
        %vm1351 = vcmp.ne.s32.totalorder %v1328, 0
        %vm1352 = vcmp.ne.s32.totalorder %v1339, 0
        %vm1353 = vcmp.ne.s32.totalorder %v1350, 0
        %vm1354 = vcmp.lt.s32.totalorder %v1328, 0
        %vm1355 = vcmp.lt.s32.totalorder %v1339, 0
        %vm1356 = vcmp.lt.s32.totalorder %v1350, 0
        %vm1357 = vmand %vm1354, %vm1351
        %vm1358 = vmand %vm1355, %vm1352
        %vm1359 = vmand %vm1356, %vm1353
        %v1360 = vadd.s32 %v1328, 18
        %v1361 = vadd.s32 %v1339, 18
        %v1362 = vadd.s32 %v1350, 18
        %v1363 = vsel %vm1357, %v1360, %v1328
        %v1364 = vsel %vm1358, %v1361, %v1339
        %v1365 = vsel %vm1359, %v1362, %v1350
        %vm1366 = vcmp.lt.s32.totalorder %v1363, 16
        %vm1367 = vcmp.lt.s32.totalorder %v1364, 16
        %vm1368 = vcmp.lt.s32.totalorder %v1365, 16
        %v1369 = vsel %vm1366, 1, 0
        %v1370 = vsel %vm1367, 1, 0
        %v1371 = vsel %vm1368, 1, 0
        %vm1372 = vcmp.eq.s32.totalorder %v1369, 1
        %vm1373 = vcmp.eq.s32.totalorder %v1370, 1
        %vm1374 = vcmp.eq.s32.totalorder %v1371, 1
        %v1375 = vsel %vm1372, %v1307, 0.0
        %v1376 = vsel %vm1373, %v1308, 0.0
        %v1377 = vsel %vm1374, %v1309, 0.0
        %v1378 = vadd.f32 %v1375, %v1376
        %v1379 = vsel %vm1312, %v1377, 0.0
        %v1380 = vadd.f32 %v1378, %v1379
        %1381 = vadd.xlane.f32.xlu0 %v1380
        %v1382 = vpop.xlane.xlu0 %1381
        %vm1383 = vcmask 7168
        %1384 = vst.msk [vmem:[%s206] sm:$0xff] %vm1383, %v1382
        %v1385 = vmul.f32 %v1375, %v1375
        %v1386 = vmul.f32 %v1376, %v1376
        %v1387 = vmul.f32 %v1377, %v1377
        %v1388 = vadd.f32 %v1385, %v1386
        %v1389 = vsel %vm1312, %v1387, 0.0
        %v1390 = vadd.f32 %v1388, %v1389
        %1391 = vadd.xlane.f32.xlu0 %v1390
        %v1392 = vpop.xlane.xlu0 %1391
        %vm1393 = vcmask 15368
        %1394 = vst.msk [vmem:[%s206] sm:$0xff] %vm1393, %v1392
        %s1395 = sand.u32 %s95, 1
        %s1396 = scalar_lea.sflag [#allocation3], %s1395
        %s1397 = sand.u32 %s95, 1
        %s1398 = smul.addr %s1397, 24
        %s1399 = scalar_lea.vmem [#allocation2], %s1398
        %p1400 = scmp.lt.s32.totalorder %s19, 1
        %s1401 = scalar_select %p1400, %s19, 1
        %s1402 = smul.addr %s1401, 8
        %s1403 = scalar_lea.vmem %s4, %s1402
        // Predicated region
        $region33: #{tpu_custom_call.1} parent=31 // pred_check
          %p1404 = pneg %p105
        $region34: #{tpu_custom_call.1} parent=31 // pred_check_branch
          %1406 = sbr.rel (%p1404) target = $region36
        $region35: #{tpu_custom_call.1} parent=31 // pred_region
          %s1408 = ssub.s32 384, 384
          %1409 = vsyncadd %s1396, %s1408
          %s1410 = smul.addr %s19, 3
          %s1411 = smul.addr %s1410, 128
          %s1412 = scalar_lea.hbm %s3, %s1411
          %s1414 = sshll.u32 %s1399, 4
          %s1415 = int_to_ptr.vmem [resolvable:$true] %s1414
          %1417 = dma.vmem_to_hbm [thread:$0]  %s1415, 384, %s1412, %s1396
        $region36: #{tpu_custom_call.1} parent=31 // pred_fallthru
          _
        // Predicated region
        $region37: #{tpu_custom_call.1} parent=31 // pred_check
          %p1418 = pneg %p131
        $region38: #{tpu_custom_call.1} parent=31 // pred_check_branch
          %1420 = sbr.rel (%p1418) target = $region40
        $region39: #{tpu_custom_call.1} parent=31 // pred_region
          _
        $region40: #{tpu_custom_call.1} parent=31 // pred_fallthru
          _
      $region32: #{tpu_custom_call.1} parent=5 // pred_fallthru
        _
      %p1421 = scmp.le.s32.totalorder 2, %s14
      // Predicated region
      $region41: #{tpu_custom_call.1} parent=5 // pred_check
        %p1422 = pneg %p1421
      $region42: #{tpu_custom_call.1} parent=5 // pred_check_branch
        %1424 = sbr.rel (%p1422) target = $region44
      $region43: #{tpu_custom_call.1} parent=5 // pred_region
        %s1425 = ssub.s32 %s14, 2
        // Predicated region
        $region45: #{tpu_custom_call.1} parent=43 // pred_check
          %p1426 = pneg %p111
        $region46: #{tpu_custom_call.1} parent=43 // pred_check_branch
          %1428 = sbr.rel (%p1426) target = $region48
        $region47: #{tpu_custom_call.1} parent=43 // pred_region
          %s1429 = sand.u32 %s96, 1
          %s1430 = scalar_lea.sflag [#allocation3], %s1429
          %s1431 = sand.u32 %s96, 1
          %s1432 = smul.addr %s1431, 24
          %s1433 = scalar_lea.vmem [#allocation2], %s1432
          %1434 = dma.done %s1430, 384
        $region48: #{tpu_custom_call.1} parent=43 // pred_fallthru
          _
        // Predicated region
        $region49: #{tpu_custom_call.1} parent=43 // pred_check
          %p1435 = pneg %p137
        $region50: #{tpu_custom_call.1} parent=43 // pred_check_branch
          %1437 = sbr.rel (%p1435) target = $region52
        $region51: #{tpu_custom_call.1} parent=43 // pred_region
          %p1438 = scmp.lt.s32.totalorder %s20, 1
          %s1439 = scalar_select %p1438, %s20, 1
          %s1440 = smul.addr %s1439, 8
          %s1441 = scalar_lea.vmem %s4, %s1440
        $region52: #{tpu_custom_call.1} parent=43 // pred_fallthru
          _
      $region44: #{tpu_custom_call.1} parent=5 // pred_fallthru
        _
    $region6: #{tpu_custom_call.1} parent=1 // loop_footer
      %s18 = sadd.s32 1, %s14
    $region7: #{tpu_custom_call.1} parent=1 // loop_footer_branch
      %13 = sbr.rel target = $region3
    $region8: #{tpu_custom_call.1} parent=1 // loop_exit
      _
    %1442 = vsyncpa [#allocation3], 1
    %s1443 = scalar_lea.sflag [#allocation3], 1
    %1444 = vsyncpa %s1443, 1

</llo_original>
